<compile_context>
chip_gen: v5e
topology: v5e:2x2
jax: 0.10.0
libtpu: 0.0.40
codegen_flags: <defaults>
</compile_context>

<pallas_src>
import math

import jax
import jax.numpy as jnp
from jax.experimental import pallas as pl
from jax.experimental.pallas import tpu as pltpu

# ---------------- config (small, deterministic) ----------------
B = 2          # batch
C_IN = 4       # backbone input channels
C_OUT = 3      # classes
SEQ_LEN = 16   # time steps
NF = 8         # inception filters (head_nf = 4 * NF)
DEPTH = 6      # inception modules
KS = 9         # largest kernel size
VOCAB = 8      # categorical vocab (CateEncoder assumption)
N_NUME = 10    # nume_encoder = Conv1d(10, c_in, 1)
N_DEMO = 4     # demo_encoder = Linear(4, c_in)
BN_EPS = 1e-5

NCH = 4 * NF           # 32 channels after branch concat
KW = KS * NF           # 72 im2col columns for the 9 taps
HALF = (KS - 1) // 2   # 4 ('same' padding for the largest kernel)
KROW = KW + NCH        # 104: [taps | maxpool] K rows
KROW_RES = KROW + NCH  # 136: + residual channels (used only at d % 3 == 2)

# tsai kernel-size schedule: [ks // 2**i for i in range(3)], made odd -> [9, 3, 1]
KSS = [k if k % 2 == 1 else k - 1 for k in (KS // (2 ** i) for i in range(3))]

# bf16 weight-slab row layout (all rows are 32 lanes wide)
R_ENC = 0                                  # (32, 32) fused encoder weight
R_WMOD = R_ENC + NCH                       # 6 x (136, 32) fused module weights (BN + shortcuts folded)
R_WB = R_WMOD + DEPTH * KROW_RES           # (64, 32)  bottleneck 1x1 weights, packed 4-per-row-group
R_HEAD = R_WB + 2 * NCH                    # (32, 32)  head weight * (1/L), first C_OUT cols used
W_ROWS = R_HEAD + NCH                      # 944 total rows

# f32 misc slab: rows [0:DEPTH] = folded per-module BN bias (+ shortcut BN bias),
#                row DEPTH = head bias (padded to 32 lanes)
MISC_ROWS = 8


# ---------------- Pallas kernel (whole forward pass) ----------------
def inception_kernel(data_ref, w_ref, misc_ref, out_ref):
    f32, bf16 = jnp.float32, jnp.bfloat16
    L = SEQ_LEN

    def mm(x, w):
        # (B, L, K) x (K, N) -> (B, L, N); bf16 operands, f32 MXU accumulation
        bb, ll, kk = x.shape
        y = jnp.dot(x.reshape(bb * ll, kk).astype(bf16), w,
                    preferred_element_type=f32)
        return y.reshape(bb, ll, w.shape[-1])

    # hoist the small f32 constants out of the unrolled loop (one load)
    misc = misc_ref[...]                       # (8, 32) f32
    b_mod = misc[0:DEPTH, :]                   # per-module folded BN biases
    b_head = misc[DEPTH:DEPTH + 1, :]          # head bias (lane padded)

    # ---- encoders fused into ONE matmul:
    #      h = cate_emb(cate) + nume_conv1x1(nume) + demo_linear(demo)[:, :, None]
    # data columns: [one-hot cate | nume | demo broadcast | zero pad] (packed in wrapper)
    x = mm(data_ref[...], w_ref[R_ENC:R_ENC + NCH, :])        # (B, L, 32) f32; only c_in live

    # ---- InceptionBlockPlus backbone (residual every 3rd module)
    res = x
    for d in range(DEPTH):
        # bottleneck 1x1 (weights packed 4-per-row-group in the slab)
        rb = R_WB + NCH * (d // 4)
        lb = NF * (d % 4)
        wb = w_ref[rb:rb + NCH, :][:, lb:lb + NF]              # (32, 8) bf16
        xb = mm(x, wb)                                         # (B, L, 8) f32

        # 9 time-shifted taps of xb ('same' zero padding), assembled as values
        zpad = jnp.zeros((B, HALF, NF), f32)
        xp = jnp.concatenate([zpad, xb, zpad], axis=1)         # (B, L + 8, 8)
        taps = [xp[:, j:j + L, :] for j in range(KS)]          # tap_j[:, t] = xb[:, t + j - 4]

        # MaxPool1d(3, stride=1, padding=1) of the module input, in registers.
        # Replicate padding == PyTorch's implicit -inf padding here because the
        # centre element is always inside the window.
        xm = jnp.concatenate([x[:, 0:1, :], x, x[:, L - 1:L, :]], axis=1)   # (B, L + 2, 32)
        mp = jnp.maximum(jnp.maximum(x, xm[:, 0:L, :]), xm[:, 2:L + 2, :])

        wm0 = R_WMOD + d * KROW_RES
        if d % 3 != 2:
            # one fused matmul: [conv9 | conv3 | conv1 | mp-conv] + folded BN, then ReLU
            xin = jnp.concatenate(taps + [mp], axis=-1)                        # (B, L, 104)
            y = mm(xin, w_ref[wm0:wm0 + KROW, :]) + b_mod[d:d + 1, :]
            x = jnp.maximum(y, 0.0)
        else:
            # residual step: the shortcut (ConvBlock+BN at d==2, BN at d==5) is
            # host-folded into 32 extra K rows of the same fused matmul.
            xin = jnp.concatenate(taps + [mp, res], axis=-1)                   # (B, L, 136)
            y = mm(xin, w_ref[wm0:wm0 + KROW_RES, :]) + b_mod[d:d + 1, :]
            x = jnp.maximum(y, 0.0)
            res = x

    # ---- head: GAP1d (1/L folded into the weight) + Linear(4*NF, C_OUT)
    gap = jnp.sum(x, axis=1)                                   # (B, 32) f32
    logits = jnp.dot(gap.astype(bf16), w_ref[R_HEAD:R_HEAD + NCH, :],
                     preferred_element_type=f32)               # (B, 32)
    out_ref[...] = (logits + b_head).astype(out_ref.dtype)     # lane-dense (B, 32)


# ---------------- parameter construction (deterministic, host-side folding) ----------------
def build_params(key):
    f32 = jnp.float32
    keys = iter(jax.random.split(key, 64))
    nk = lambda: next(keys)

    def conv_w(k_, c_in, c_out, k):
        # kaiming_normal_(mode='fan_out', nonlinearity='relu') -> std = sqrt(2 / (c_out * k))
        std = math.sqrt(2.0 / (c_out * k))
        return std * jax.random.normal(k_, (k, c_in, c_out), f32)

    def conv1x1_w(k_, c_in, c_out):
        std = math.sqrt(2.0 / c_out)
        return std * jax.random.normal(k_, (c_in, c_out), f32)

    def bn_fold(c):
        # inference BN with weight=1, bias=0, running_mean=0, running_var=1
        gamma, beta = jnp.ones((c,), f32), jnp.zeros((c,), f32)
        mean, var = jnp.zeros((c,), f32), jnp.ones((c,), f32)
        s = gamma / jnp.sqrt(var + BN_EPS)
        return s, beta - mean * s

    # ---- encoders fused into one (32, 32) matrix (input-slab columns -> c_in channels)
    emb = jax.random.normal(nk(), (VOCAB, C_IN), f32)                    # CateEncoder embedding
    w_nume = conv1x1_w(nk(), N_NUME, C_IN)                               # Conv1d(10, c_in, 1, bias=False)
    lim = 1.0 / math.sqrt(N_DEMO)
    w_demo = jax.random.uniform(nk(), (N_DEMO, C_IN), f32, -lim, lim)    # Linear(4, c_in, bias=False)
    w_enc = jnp.zeros((NCH, NCH), f32)
    w_enc = w_enc.at[0:VOCAB, 0:C_IN].set(emb)
    w_enc = w_enc.at[VOCAB:VOCAB + N_NUME, 0:C_IN].set(w_nume)
    w_enc = w_enc.at[VOCAB + N_NUME:VOCAB + N_NUME + N_DEMO, 0:C_IN].set(w_demo)

    # ---- inception modules: bottleneck weights + fused branch weights (module BN folded)
    w_b = jnp.zeros((DEPTH, NCH, NF), f32)
    w_mod = jnp.zeros((DEPTH, KROW_RES, NCH), f32)
    b_mod = jnp.zeros((DEPTH, NCH), f32)
    for d in range(DEPTH):
        ni = C_IN if d == 0 else NCH
        w_b = w_b.at[d, 0:ni, :].set(conv1x1_w(nk(), ni, NF))            # bottleneck 1x1
        wf = jnp.zeros((KROW, NCH), f32)
        for bi, k in enumerate(KSS):                                     # [9, 3, 1]
            wk = conv_w(nk(), NF, NF, k)                                 # (k, NF, NF)
            off = (KS - k) // 2                                          # center-aligned taps
            for j in range(k):
                wf = wf.at[(off + j) * NF:(off + j + 1) * NF,
                           bi * NF:(bi + 1) * NF].set(wk[j])
        wf = wf.at[KW:KW + ni, 3 * NF:4 * NF].set(conv1x1_w(nk(), ni, NF))  # maxpool-branch 1x1
        s, b = bn_fold(NCH)                                              # module BN fold
        w_mod = w_mod.at[d, 0:KROW, :].set(wf * s[None, :])
        b_mod = b_mod.at[d].set(b)

    # ---- shortcuts folded into the residual-step module matmuls
    # d==2: ConvBlock(c_in, 4nf, 1) + BN  (res has only c_in live channels)
    s0, b0 = bn_fold(NCH)
    w_sc0 = conv1x1_w(nk(), C_IN, NCH) * s0[None, :]                     # (4, 32)
    w_mod = w_mod.at[2, KROW:KROW + C_IN, :].set(w_sc0)
    b_mod = b_mod.at[2].add(b0)
    # d==5: BN1d(4nf) shortcut -> diag(scale)
    s1, b1 = bn_fold(NCH)
    w_mod = w_mod.at[5, KROW:KROW + NCH, :].set(jnp.diag(s1))
    b_mod = b_mod.at[5].add(b1)

    # ---- head: GAP's 1/L folded into the Linear weight; lane-padded to 32
    lim = 1.0 / math.sqrt(NCH)
    w_head = jax.random.uniform(nk(), (NCH, C_OUT), f32, -lim, lim)
    b_head = jax.random.uniform(nk(), (C_OUT,), f32, -lim, lim)
    w_head_pad = jnp.zeros((NCH, NCH), f32).at[:, 0:C_OUT].set(w_head / SEQ_LEN)
    b_head_pad = jnp.zeros((NCH,), f32).at[0:C_OUT].set(b_head)

    # ---- single lane-dense bf16 weight slab (one DMA)
    wslab = jnp.zeros((W_ROWS, NCH), f32)
    wslab = wslab.at[R_ENC:R_ENC + NCH, :].set(w_enc)
    for d in range(DEPTH):
        wslab = wslab.at[R_WMOD + d * KROW_RES:R_WMOD + (d + 1) * KROW_RES, :].set(w_mod[d])
    for d in range(DEPTH):                                               # pack bottlenecks 4-per-row-group
        rb = R_WB + NCH * (d // 4)
        lb = NF * (d % 4)
        wslab = wslab.at[rb:rb + NCH, lb:lb + NF].set(w_b[d])
    wslab = wslab.at[R_HEAD:R_HEAD + NCH, :].set(w_head_pad)
    wslab = wslab.astype(jnp.bfloat16)

    # ---- small f32 misc slab (biases kept f32 for the VPU adds)
    misc = jnp.zeros((MISC_ROWS, NCH), f32)
    misc = misc.at[0:DEPTH, :].set(b_mod)
    misc = misc.at[DEPTH, :].set(b_head_pad)
    return wslab, misc


# ---------------- wrapper ----------------
def inception_time_plus_forward(cate, nume, demo, params):
    wslab, misc = params
    f32 = jnp.float32
    # glue: one-hot the categorical codes, move nume to (B, L, C), broadcast demo
    # over time, and pack everything into ONE lane-padded bf16 input slab whose
    # columns line up with the fused encoder weight rows.
    cate_oh = jax.nn.one_hot(cate, VOCAB, dtype=f32)                      # (B, L, 8)
    nume_t = jnp.transpose(nume, (0, 2, 1)).astype(f32)                   # (B, L, 10)
    demo_b = jnp.broadcast_to(demo.astype(f32)[:, None, :], (B, SEQ_LEN, N_DEMO))
    pad = jnp.zeros((B, SEQ_LEN, NCH - (VOCAB + N_NUME + N_DEMO)), f32)
    data = jnp.concatenate([cate_oh, nume_t, demo_b, pad], axis=-1).astype(jnp.bfloat16)

    inputs = (data, wslab, misc)
    in_specs = [pl.BlockSpec(a.shape, lambda i, nd=a.ndim: (0,) * nd) for a in inputs]
    out = pl.pallas_call(
        inception_kernel,
        grid=(1,),
        in_specs=in_specs,
        out_specs=pl.BlockSpec((B, NCH), lambda i: (0, 0)),
        out_shape=jax.ShapeDtypeStruct((B, NCH), f32),                    # lane-dense logits
        compiler_params=pltpu.CompilerParams(
            dimension_semantics=("arbitrary",),
        ),
    )(*inputs)
    return out[:, 0:C_OUT]                                                # slice to classes outside


if __name__ == "__main__":
    key = jax.random.PRNGKey(0)
    k_cate, k_nume, k_demo, k_params = jax.random.split(key, 4)
    cate = jax.random.randint(k_cate, (B, SEQ_LEN), 0, VOCAB)                 # (2, 16) int codes
    nume = jax.random.normal(k_nume, (B, N_NUME, SEQ_LEN), jnp.float32)       # (2, 10, 16)
    demo = jax.random.normal(k_demo, (B, N_DEMO), jnp.float32)                # (2, 4)
    params = build_params(k_params)

    out = inception_time_plus_forward(cate, nume, demo, params)
    out = jax.block_until_ready(out)
    assert out.shape == (B, C_OUT) and bool(jnp.all(jnp.isfinite(out)))
    print("KERNEL_OK")
</pallas_src>

<mosaic_0001>
module attributes {stable_mosaic.version = 11 : i64} {
  func.func @inception_kernel(%arg0: i32, %arg1: memref<2x16x32xbf16, #tpu.memory_space<vmem>>, %arg2: memref<944x32xbf16, #tpu.memory_space<vmem>>, %arg3: memref<8x32xf32, #tpu.memory_space<vmem>>, %arg4: memref<2x32xf32, #tpu.memory_space<vmem>>) attributes {dimension_semantics = [#tpu.dimension_semantics<arbitrary>], iteration_bounds = array<i64: 1>, scalar_prefetch = 0 : i64, scratch_operands = 0 : i64, tpu.core_type = #tpu.core_type<tc>, window_params = [{pipeline_mode = #tpu.pipeline_mode<synchronous>, transform_indices = @transform_0, window_bounds = array<i64: 2, 16, 32>}, {pipeline_mode = #tpu.pipeline_mode<synchronous>, transform_indices = @transform_1, window_bounds = array<i64: 944, 32>}, {pipeline_mode = #tpu.pipeline_mode<synchronous>, transform_indices = @transform_2, window_bounds = array<i64: 8, 32>}, {pipeline_mode = #tpu.pipeline_mode<synchronous>, transform_indices = @transform_3, window_bounds = array<i64: 2, 32>}]} {
    %c0 = arith.constant 0 : index
    %c0_0 = arith.constant 0 : index
    %0 = vector.load %arg3[%c0, %c0_0] : memref<8x32xf32, #tpu.memory_space<vmem>>, vector<8x32xf32>
    %1 = vector.extract_strided_slice %0 {offsets = [0, 0], sizes = [6, 32], strides = [1, 1]} : vector<8x32xf32> to vector<6x32xf32>
    %2 = vector.extract_strided_slice %0 {offsets = [6, 0], sizes = [1, 32], strides = [1, 1]} : vector<8x32xf32> to vector<1x32xf32>
    %c0_1 = arith.constant 0 : index
    %c0_2 = arith.constant 0 : index
    %c0_3 = arith.constant 0 : index
    %3 = vector.load %arg1[%c0_1, %c0_2, %c0_3] : memref<2x16x32xbf16, #tpu.memory_space<vmem>>, vector<2x16x32xbf16>
    %c0_4 = arith.constant 0 : index
    %c0_5 = arith.constant 0 : index
    %4 = vector.load %arg2[%c0_4, %c0_5] : memref<944x32xbf16, #tpu.memory_space<vmem>>, vector<32x32xbf16>
    %5 = vector.shape_cast %3 : vector<2x16x32xbf16> to vector<32x32xbf16>
    %cst = arith.constant dense<0.000000e+00> : vector<32x32xf32>
    %6 = tpu.matmul %5, %4, %cst {dimension_numbers = #tpu.dot_dimension_numbers<[1], [0], [0], [1], [0, 0, 1, 1], [], []>} : vector<32x32xbf16>, vector<32x32xbf16>, vector<32x32xf32> -> vector<32x32xf32>
    %7 = vector.shape_cast %6 : vector<32x32xf32> to vector<2x16x32xf32>
    %c848 = arith.constant 848 : index
    %c0_6 = arith.constant 0 : index
    %8 = vector.load %arg2[%c848, %c0_6] : memref<944x32xbf16, #tpu.memory_space<vmem>>, vector<32x32xbf16>
    %9 = vector.extract_strided_slice %8 {offsets = [0, 0], sizes = [32, 8], strides = [1, 1]} : vector<32x32xbf16> to vector<32x8xbf16>
    %10 = vector.shape_cast %7 : vector<2x16x32xf32> to vector<32x32xf32>
    %11 = arith.truncf %10 : vector<32x32xf32> to vector<32x32xbf16>
    %cst_7 = arith.constant dense<0.000000e+00> : vector<32x8xf32>
    %12 = tpu.matmul %11, %9, %cst_7 {dimension_numbers = #tpu.dot_dimension_numbers<[1], [0], [0], [1], [0, 0, 1, 1], [], []>} : vector<32x32xbf16>, vector<32x8xbf16>, vector<32x8xf32> -> vector<32x8xf32>
    %13 = vector.shape_cast %12 : vector<32x8xf32> to vector<2x16x8xf32>
    %cst_8 = arith.constant 0.000000e+00 : f32
    %14 = vector.broadcast %cst_8 : f32 to vector<2x4x8xf32>
    %15 = tpu.concatenate %14, %13, %14 in 1 : vector<2x4x8xf32>, vector<2x16x8xf32>, vector<2x4x8xf32> -> vector<2x24x8xf32>
    %16 = vector.extract_strided_slice %15 {offsets = [0, 0, 0], sizes = [2, 16, 8], strides = [1, 1, 1]} : vector<2x24x8xf32> to vector<2x16x8xf32>
    %17 = vector.extract_strided_slice %15 {offsets = [0, 1, 0], sizes = [2, 16, 8], strides = [1, 1, 1]} : vector<2x24x8xf32> to vector<2x16x8xf32>
    %18 = vector.extract_strided_slice %15 {offsets = [0, 2, 0], sizes = [2, 16, 8], strides = [1, 1, 1]} : vector<2x24x8xf32> to vector<2x16x8xf32>
    %19 = vector.extract_strided_slice %15 {offsets = [0, 3, 0], sizes = [2, 16, 8], strides = [1, 1, 1]} : vector<2x24x8xf32> to vector<2x16x8xf32>
    %20 = vector.extract_strided_slice %15 {offsets = [0, 4, 0], sizes = [2, 16, 8], strides = [1, 1, 1]} : vector<2x24x8xf32> to vector<2x16x8xf32>
    %21 = vector.extract_strided_slice %15 {offsets = [0, 5, 0], sizes = [2, 16, 8], strides = [1, 1, 1]} : vector<2x24x8xf32> to vector<2x16x8xf32>
    %22 = vector.extract_strided_slice %15 {offsets = [0, 6, 0], sizes = [2, 16, 8], strides = [1, 1, 1]} : vector<2x24x8xf32> to vector<2x16x8xf32>
    %23 = vector.extract_strided_slice %15 {offsets = [0, 7, 0], sizes = [2, 16, 8], strides = [1, 1, 1]} : vector<2x24x8xf32> to vector<2x16x8xf32>
    %24 = vector.extract_strided_slice %15 {offsets = [0, 8, 0], sizes = [2, 16, 8], strides = [1, 1, 1]} : vector<2x24x8xf32> to vector<2x16x8xf32>
    %25 = vector.extract_strided_slice %7 {offsets = [0, 0, 0], sizes = [2, 1, 32], strides = [1, 1, 1]} : vector<2x16x32xf32> to vector<2x1x32xf32>
    %26 = vector.extract_strided_slice %7 {offsets = [0, 15, 0], sizes = [2, 1, 32], strides = [1, 1, 1]} : vector<2x16x32xf32> to vector<2x1x32xf32>
    %27 = tpu.concatenate %25, %7, %26 in 1 : vector<2x1x32xf32>, vector<2x16x32xf32>, vector<2x1x32xf32> -> vector<2x18x32xf32>
    %28 = vector.extract_strided_slice %27 {offsets = [0, 0, 0], sizes = [2, 16, 32], strides = [1, 1, 1]} : vector<2x18x32xf32> to vector<2x16x32xf32>
    %29 = arith.maximumf %7, %28 : vector<2x16x32xf32>
    %30 = vector.extract_strided_slice %27 {offsets = [0, 2, 0], sizes = [2, 16, 32], strides = [1, 1, 1]} : vector<2x18x32xf32> to vector<2x16x32xf32>
    %31 = arith.maximumf %29, %30 : vector<2x16x32xf32>
    %32 = tpu.concatenate %16, %17, %18, %19, %20, %21, %22, %23, %24, %31 in 2 : vector<2x16x8xf32>, vector<2x16x8xf32>, vector<2x16x8xf32>, vector<2x16x8xf32>, vector<2x16x8xf32>, vector<2x16x8xf32>, vector<2x16x8xf32>, vector<2x16x8xf32>, vector<2x16x8xf32>, vector<2x16x32xf32> -> vector<2x16x104xf32>
    %c32 = arith.constant 32 : index
    %c0_9 = arith.constant 0 : index
    %33 = vector.load %arg2[%c32, %c0_9] : memref<944x32xbf16, #tpu.memory_space<vmem>>, vector<104x32xbf16>
    %34 = vector.shape_cast %32 : vector<2x16x104xf32> to vector<32x104xf32>
    %35 = arith.truncf %34 : vector<32x104xf32> to vector<32x104xbf16>
    %cst_10 = arith.constant dense<0.000000e+00> : vector<32x32xf32>
    %36 = tpu.matmul %35, %33, %cst_10 {dimension_numbers = #tpu.dot_dimension_numbers<[1], [0], [0], [1], [0, 0, 1, 1], [], []>} : vector<32x104xbf16>, vector<104x32xbf16>, vector<32x32xf32> -> vector<32x32xf32>
    %37 = vector.shape_cast %36 : vector<32x32xf32> to vector<2x16x32xf32>
    %38 = vector.extract_strided_slice %1 {offsets = [0, 0], sizes = [1, 32], strides = [1, 1]} : vector<6x32xf32> to vector<1x32xf32>
    %39 = vector.shape_cast %38 : vector<1x32xf32> to vector<1x1x32xf32>
    %40 = vector.broadcast %39 : vector<1x1x32xf32> to vector<2x16x32xf32>
    %41 = arith.addf %37, %40 : vector<2x16x32xf32>
    %cst_11 = arith.constant 0.000000e+00 : f32
    %42 = vector.broadcast %cst_11 : f32 to vector<2x16x32xf32>
    %43 = arith.maximumf %41, %42 : vector<2x16x32xf32>
    %c848_12 = arith.constant 848 : index
    %c0_13 = arith.constant 0 : index
    %44 = vector.load %arg2[%c848_12, %c0_13] : memref<944x32xbf16, #tpu.memory_space<vmem>>, vector<32x32xbf16>
    %45 = vector.extract_strided_slice %44 {offsets = [0, 8], sizes = [32, 8], strides = [1, 1]} : vector<32x32xbf16> to vector<32x8xbf16>
    %46 = vector.shape_cast %43 : vector<2x16x32xf32> to vector<32x32xf32>
    %47 = arith.truncf %46 : vector<32x32xf32> to vector<32x32xbf16>
    %cst_14 = arith.constant dense<0.000000e+00> : vector<32x8xf32>
    %48 = tpu.matmul %47, %45, %cst_14 {dimension_numbers = #tpu.dot_dimension_numbers<[1], [0], [0], [1], [0, 0, 1, 1], [], []>} : vector<32x32xbf16>, vector<32x8xbf16>, vector<32x8xf32> -> vector<32x8xf32>
    %49 = vector.shape_cast %48 : vector<32x8xf32> to vector<2x16x8xf32>
    %cst_15 = arith.constant 0.000000e+00 : f32
    %50 = vector.broadcast %cst_15 : f32 to vector<2x4x8xf32>
    %51 = tpu.concatenate %50, %49, %50 in 1 : vector<2x4x8xf32>, vector<2x16x8xf32>, vector<2x4x8xf32> -> vector<2x24x8xf32>
    %52 = vector.extract_strided_slice %51 {offsets = [0, 0, 0], sizes = [2, 16, 8], strides = [1, 1, 1]} : vector<2x24x8xf32> to vector<2x16x8xf32>
    %53 = vector.extract_strided_slice %51 {offsets = [0, 1, 0], sizes = [2, 16, 8], strides = [1, 1, 1]} : vector<2x24x8xf32> to vector<2x16x8xf32>
    %54 = vector.extract_strided_slice %51 {offsets = [0, 2, 0], sizes = [2, 16, 8], strides = [1, 1, 1]} : vector<2x24x8xf32> to vector<2x16x8xf32>
    %55 = vector.extract_strided_slice %51 {offsets = [0, 3, 0], sizes = [2, 16, 8], strides = [1, 1, 1]} : vector<2x24x8xf32> to vector<2x16x8xf32>
    %56 = vector.extract_strided_slice %51 {offsets = [0, 4, 0], sizes = [2, 16, 8], strides = [1, 1, 1]} : vector<2x24x8xf32> to vector<2x16x8xf32>
    %57 = vector.extract_strided_slice %51 {offsets = [0, 5, 0], sizes = [2, 16, 8], strides = [1, 1, 1]} : vector<2x24x8xf32> to vector<2x16x8xf32>
    %58 = vector.extract_strided_slice %51 {offsets = [0, 6, 0], sizes = [2, 16, 8], strides = [1, 1, 1]} : vector<2x24x8xf32> to vector<2x16x8xf32>
    %59 = vector.extract_strided_slice %51 {offsets = [0, 7, 0], sizes = [2, 16, 8], strides = [1, 1, 1]} : vector<2x24x8xf32> to vector<2x16x8xf32>
    %60 = vector.extract_strided_slice %51 {offsets = [0, 8, 0], sizes = [2, 16, 8], strides = [1, 1, 1]} : vector<2x24x8xf32> to vector<2x16x8xf32>
    %61 = vector.extract_strided_slice %43 {offsets = [0, 0, 0], sizes = [2, 1, 32], strides = [1, 1, 1]} : vector<2x16x32xf32> to vector<2x1x32xf32>
    %62 = vector.extract_strided_slice %43 {offsets = [0, 15, 0], sizes = [2, 1, 32], strides = [1, 1, 1]} : vector<2x16x32xf32> to vector<2x1x32xf32>
    %63 = tpu.concatenate %61, %43, %62 in 1 : vector<2x1x32xf32>, vector<2x16x32xf32>, vector<2x1x32xf32> -> vector<2x18x32xf32>
    %64 = vector.extract_strided_slice %63 {offsets = [0, 0, 0], sizes = [2, 16, 32], strides = [1, 1, 1]} : vector<2x18x32xf32> to vector<2x16x32xf32>
    %65 = arith.maximumf %43, %64 : vector<2x16x32xf32>
    %66 = vector.extract_strided_slice %63 {offsets = [0, 2, 0], sizes = [2, 16, 32], strides = [1, 1, 1]} : vector<2x18x32xf32> to vector<2x16x32xf32>
    %67 = arith.maximumf %65, %66 : vector<2x16x32xf32>
    %68 = tpu.concatenate %52, %53, %54, %55, %56, %57, %58, %59, %60, %67 in 2 : vector<2x16x8xf32>, vector<2x16x8xf32>, vector<2x16x8xf32>, vector<2x16x8xf32>, vector<2x16x8xf32>, vector<2x16x8xf32>, vector<2x16x8xf32>, vector<2x16x8xf32>, vector<2x16x8xf32>, vector<2x16x32xf32> -> vector<2x16x104xf32>
    %c168 = arith.constant 168 : index
    %c0_16 = arith.constant 0 : index
    %69 = vector.load %arg2[%c168, %c0_16] : memref<944x32xbf16, #tpu.memory_space<vmem>>, vector<104x32xbf16>
    %70 = vector.shape_cast %68 : vector<2x16x104xf32> to vector<32x104xf32>
    %71 = arith.truncf %70 : vector<32x104xf32> to vector<32x104xbf16>
    %cst_17 = arith.constant dense<0.000000e+00> : vector<32x32xf32>
    %72 = tpu.matmul %71, %69, %cst_17 {dimension_numbers = #tpu.dot_dimension_numbers<[1], [0], [0], [1], [0, 0, 1, 1], [], []>} : vector<32x104xbf16>, vector<104x32xbf16>, vector<32x32xf32> -> vector<32x32xf32>
    %73 = vector.shape_cast %72 : vector<32x32xf32> to vector<2x16x32xf32>
    %74 = vector.extract_strided_slice %1 {offsets = [1, 0], sizes = [1, 32], strides = [1, 1]} : vector<6x32xf32> to vector<1x32xf32>
    %75 = vector.shape_cast %74 : vector<1x32xf32> to vector<1x1x32xf32>
    %76 = vector.broadcast %75 : vector<1x1x32xf32> to vector<2x16x32xf32>
    %77 = arith.addf %73, %76 : vector<2x16x32xf32>
    %cst_18 = arith.constant 0.000000e+00 : f32
    %78 = vector.broadcast %cst_18 : f32 to vector<2x16x32xf32>
    %79 = arith.maximumf %77, %78 : vector<2x16x32xf32>
    %c848_19 = arith.constant 848 : index
    %c0_20 = arith.constant 0 : index
    %80 = vector.load %arg2[%c848_19, %c0_20] : memref<944x32xbf16, #tpu.memory_space<vmem>>, vector<32x32xbf16>
    %81 = vector.extract_strided_slice %80 {offsets = [0, 16], sizes = [32, 8], strides = [1, 1]} : vector<32x32xbf16> to vector<32x8xbf16>
    %82 = vector.shape_cast %79 : vector<2x16x32xf32> to vector<32x32xf32>
    %83 = arith.truncf %82 : vector<32x32xf32> to vector<32x32xbf16>
    %cst_21 = arith.constant dense<0.000000e+00> : vector<32x8xf32>
    %84 = tpu.matmul %83, %81, %cst_21 {dimension_numbers = #tpu.dot_dimension_numbers<[1], [0], [0], [1], [0, 0, 1, 1], [], []>} : vector<32x32xbf16>, vector<32x8xbf16>, vector<32x8xf32> -> vector<32x8xf32>
    %85 = vector.shape_cast %84 : vector<32x8xf32> to vector<2x16x8xf32>
    %cst_22 = arith.constant 0.000000e+00 : f32
    %86 = vector.broadcast %cst_22 : f32 to vector<2x4x8xf32>
    %87 = tpu.concatenate %86, %85, %86 in 1 : vector<2x4x8xf32>, vector<2x16x8xf32>, vector<2x4x8xf32> -> vector<2x24x8xf32>
    %88 = vector.extract_strided_slice %87 {offsets = [0, 0, 0], sizes = [2, 16, 8], strides = [1, 1, 1]} : vector<2x24x8xf32> to vector<2x16x8xf32>
    %89 = vector.extract_strided_slice %87 {offsets = [0, 1, 0], sizes = [2, 16, 8], strides = [1, 1, 1]} : vector<2x24x8xf32> to vector<2x16x8xf32>
    %90 = vector.extract_strided_slice %87 {offsets = [0, 2, 0], sizes = [2, 16, 8], strides = [1, 1, 1]} : vector<2x24x8xf32> to vector<2x16x8xf32>
    %91 = vector.extract_strided_slice %87 {offsets = [0, 3, 0], sizes = [2, 16, 8], strides = [1, 1, 1]} : vector<2x24x8xf32> to vector<2x16x8xf32>
    %92 = vector.extract_strided_slice %87 {offsets = [0, 4, 0], sizes = [2, 16, 8], strides = [1, 1, 1]} : vector<2x24x8xf32> to vector<2x16x8xf32>
    %93 = vector.extract_strided_slice %87 {offsets = [0, 5, 0], sizes = [2, 16, 8], strides = [1, 1, 1]} : vector<2x24x8xf32> to vector<2x16x8xf32>
    %94 = vector.extract_strided_slice %87 {offsets = [0, 6, 0], sizes = [2, 16, 8], strides = [1, 1, 1]} : vector<2x24x8xf32> to vector<2x16x8xf32>
    %95 = vector.extract_strided_slice %87 {offsets = [0, 7, 0], sizes = [2, 16, 8], strides = [1, 1, 1]} : vector<2x24x8xf32> to vector<2x16x8xf32>
    %96 = vector.extract_strided_slice %87 {offsets = [0, 8, 0], sizes = [2, 16, 8], strides = [1, 1, 1]} : vector<2x24x8xf32> to vector<2x16x8xf32>
    %97 = vector.extract_strided_slice %79 {offsets = [0, 0, 0], sizes = [2, 1, 32], strides = [1, 1, 1]} : vector<2x16x32xf32> to vector<2x1x32xf32>
    %98 = vector.extract_strided_slice %79 {offsets = [0, 15, 0], sizes = [2, 1, 32], strides = [1, 1, 1]} : vector<2x16x32xf32> to vector<2x1x32xf32>
    %99 = tpu.concatenate %97, %79, %98 in 1 : vector<2x1x32xf32>, vector<2x16x32xf32>, vector<2x1x32xf32> -> vector<2x18x32xf32>
    %100 = vector.extract_strided_slice %99 {offsets = [0, 0, 0], sizes = [2, 16, 32], strides = [1, 1, 1]} : vector<2x18x32xf32> to vector<2x16x32xf32>
    %101 = arith.maximumf %79, %100 : vector<2x16x32xf32>
    %102 = vector.extract_strided_slice %99 {offsets = [0, 2, 0], sizes = [2, 16, 32], strides = [1, 1, 1]} : vector<2x18x32xf32> to vector<2x16x32xf32>
    %103 = arith.maximumf %101, %102 : vector<2x16x32xf32>
    %104 = tpu.concatenate %88, %89, %90, %91, %92, %93, %94, %95, %96, %103, %7 in 2 : vector<2x16x8xf32>, vector<2x16x8xf32>, vector<2x16x8xf32>, vector<2x16x8xf32>, vector<2x16x8xf32>, vector<2x16x8xf32>, vector<2x16x8xf32>, vector<2x16x8xf32>, vector<2x16x8xf32>, vector<2x16x32xf32>, vector<2x16x32xf32> -> vector<2x16x136xf32>
    %c304 = arith.constant 304 : index
    %c0_23 = arith.constant 0 : index
    %105 = vector.load %arg2[%c304, %c0_23] : memref<944x32xbf16, #tpu.memory_space<vmem>>, vector<136x32xbf16>
    %106 = vector.shape_cast %104 : vector<2x16x136xf32> to vector<32x136xf32>
    %107 = arith.truncf %106 : vector<32x136xf32> to vector<32x136xbf16>
    %cst_24 = arith.constant dense<0.000000e+00> : vector<32x32xf32>
    %108 = tpu.matmul %107, %105, %cst_24 {dimension_numbers = #tpu.dot_dimension_numbers<[1], [0], [0], [1], [0, 0, 1, 1], [], []>} : vector<32x136xbf16>, vector<136x32xbf16>, vector<32x32xf32> -> vector<32x32xf32>
    %109 = vector.shape_cast %108 : vector<32x32xf32> to vector<2x16x32xf32>
    %110 = vector.extract_strided_slice %1 {offsets = [2, 0], sizes = [1, 32], strides = [1, 1]} : vector<6x32xf32> to vector<1x32xf32>
    %111 = vector.shape_cast %110 : vector<1x32xf32> to vector<1x1x32xf32>
    %112 = vector.broadcast %111 : vector<1x1x32xf32> to vector<2x16x32xf32>
    %113 = arith.addf %109, %112 : vector<2x16x32xf32>
    %cst_25 = arith.constant 0.000000e+00 : f32
    %114 = vector.broadcast %cst_25 : f32 to vector<2x16x32xf32>
    %115 = arith.maximumf %113, %114 : vector<2x16x32xf32>
    %c848_26 = arith.constant 848 : index
    %c0_27 = arith.constant 0 : index
    %116 = vector.load %arg2[%c848_26, %c0_27] : memref<944x32xbf16, #tpu.memory_space<vmem>>, vector<32x32xbf16>
    %117 = vector.extract_strided_slice %116 {offsets = [0, 24], sizes = [32, 8], strides = [1, 1]} : vector<32x32xbf16> to vector<32x8xbf16>
    %118 = vector.shape_cast %115 : vector<2x16x32xf32> to vector<32x32xf32>
    %119 = arith.truncf %118 : vector<32x32xf32> to vector<32x32xbf16>
    %cst_28 = arith.constant dense<0.000000e+00> : vector<32x8xf32>
    %120 = tpu.matmul %119, %117, %cst_28 {dimension_numbers = #tpu.dot_dimension_numbers<[1], [0], [0], [1], [0, 0, 1, 1], [], []>} : vector<32x32xbf16>, vector<32x8xbf16>, vector<32x8xf32> -> vector<32x8xf32>
    %121 = vector.shape_cast %120 : vector<32x8xf32> to vector<2x16x8xf32>
    %cst_29 = arith.constant 0.000000e+00 : f32
    %122 = vector.broadcast %cst_29 : f32 to vector<2x4x8xf32>
    %123 = tpu.concatenate %122, %121, %122 in 1 : vector<2x4x8xf32>, vector<2x16x8xf32>, vector<2x4x8xf32> -> vector<2x24x8xf32>
    %124 = vector.extract_strided_slice %123 {offsets = [0, 0, 0], sizes = [2, 16, 8], strides = [1, 1, 1]} : vector<2x24x8xf32> to vector<2x16x8xf32>
    %125 = vector.extract_strided_slice %123 {offsets = [0, 1, 0], sizes = [2, 16, 8], strides = [1, 1, 1]} : vector<2x24x8xf32> to vector<2x16x8xf32>
    %126 = vector.extract_strided_slice %123 {offsets = [0, 2, 0], sizes = [2, 16, 8], strides = [1, 1, 1]} : vector<2x24x8xf32> to vector<2x16x8xf32>
    %127 = vector.extract_strided_slice %123 {offsets = [0, 3, 0], sizes = [2, 16, 8], strides = [1, 1, 1]} : vector<2x24x8xf32> to vector<2x16x8xf32>
    %128 = vector.extract_strided_slice %123 {offsets = [0, 4, 0], sizes = [2, 16, 8], strides = [1, 1, 1]} : vector<2x24x8xf32> to vector<2x16x8xf32>
    %129 = vector.extract_strided_slice %123 {offsets = [0, 5, 0], sizes = [2, 16, 8], strides = [1, 1, 1]} : vector<2x24x8xf32> to vector<2x16x8xf32>
    %130 = vector.extract_strided_slice %123 {offsets = [0, 6, 0], sizes = [2, 16, 8], strides = [1, 1, 1]} : vector<2x24x8xf32> to vector<2x16x8xf32>
    %131 = vector.extract_strided_slice %123 {offsets = [0, 7, 0], sizes = [2, 16, 8], strides = [1, 1, 1]} : vector<2x24x8xf32> to vector<2x16x8xf32>
    %132 = vector.extract_strided_slice %123 {offsets = [0, 8, 0], sizes = [2, 16, 8], strides = [1, 1, 1]} : vector<2x24x8xf32> to vector<2x16x8xf32>
    %133 = vector.extract_strided_slice %115 {offsets = [0, 0, 0], sizes = [2, 1, 32], strides = [1, 1, 1]} : vector<2x16x32xf32> to vector<2x1x32xf32>
    %134 = vector.extract_strided_slice %115 {offsets = [0, 15, 0], sizes = [2, 1, 32], strides = [1, 1, 1]} : vector<2x16x32xf32> to vector<2x1x32xf32>
    %135 = tpu.concatenate %133, %115, %134 in 1 : vector<2x1x32xf32>, vector<2x16x32xf32>, vector<2x1x32xf32> -> vector<2x18x32xf32>
    %136 = vector.extract_strided_slice %135 {offsets = [0, 0, 0], sizes = [2, 16, 32], strides = [1, 1, 1]} : vector<2x18x32xf32> to vector<2x16x32xf32>
    %137 = arith.maximumf %115, %136 : vector<2x16x32xf32>
    %138 = vector.extract_strided_slice %135 {offsets = [0, 2, 0], sizes = [2, 16, 32], strides = [1, 1, 1]} : vector<2x18x32xf32> to vector<2x16x32xf32>
    %139 = arith.maximumf %137, %138 : vector<2x16x32xf32>
    %140 = tpu.concatenate %124, %125, %126, %127, %128, %129, %130, %131, %132, %139 in 2 : vector<2x16x8xf32>, vector<2x16x8xf32>, vector<2x16x8xf32>, vector<2x16x8xf32>, vector<2x16x8xf32>, vector<2x16x8xf32>, vector<2x16x8xf32>, vector<2x16x8xf32>, vector<2x16x8xf32>, vector<2x16x32xf32> -> vector<2x16x104xf32>
    %c440 = arith.constant 440 : index
    %c0_30 = arith.constant 0 : index
    %141 = vector.load %arg2[%c440, %c0_30] : memref<944x32xbf16, #tpu.memory_space<vmem>>, vector<104x32xbf16>
    %142 = vector.shape_cast %140 : vector<2x16x104xf32> to vector<32x104xf32>
    %143 = arith.truncf %142 : vector<32x104xf32> to vector<32x104xbf16>
    %cst_31 = arith.constant dense<0.000000e+00> : vector<32x32xf32>
    %144 = tpu.matmul %143, %141, %cst_31 {dimension_numbers = #tpu.dot_dimension_numbers<[1], [0], [0], [1], [0, 0, 1, 1], [], []>} : vector<32x104xbf16>, vector<104x32xbf16>, vector<32x32xf32> -> vector<32x32xf32>
    %145 = vector.shape_cast %144 : vector<32x32xf32> to vector<2x16x32xf32>
    %146 = vector.extract_strided_slice %1 {offsets = [3, 0], sizes = [1, 32], strides = [1, 1]} : vector<6x32xf32> to vector<1x32xf32>
    %147 = vector.shape_cast %146 : vector<1x32xf32> to vector<1x1x32xf32>
    %148 = vector.broadcast %147 : vector<1x1x32xf32> to vector<2x16x32xf32>
    %149 = arith.addf %145, %148 : vector<2x16x32xf32>
    %cst_32 = arith.constant 0.000000e+00 : f32
    %150 = vector.broadcast %cst_32 : f32 to vector<2x16x32xf32>
    %151 = arith.maximumf %149, %150 : vector<2x16x32xf32>
    %c880 = arith.constant 880 : index
    %c0_33 = arith.constant 0 : index
    %152 = vector.load %arg2[%c880, %c0_33] : memref<944x32xbf16, #tpu.memory_space<vmem>>, vector<32x32xbf16>
    %153 = vector.extract_strided_slice %152 {offsets = [0, 0], sizes = [32, 8], strides = [1, 1]} : vector<32x32xbf16> to vector<32x8xbf16>
    %154 = vector.shape_cast %151 : vector<2x16x32xf32> to vector<32x32xf32>
    %155 = arith.truncf %154 : vector<32x32xf32> to vector<32x32xbf16>
    %cst_34 = arith.constant dense<0.000000e+00> : vector<32x8xf32>
    %156 = tpu.matmul %155, %153, %cst_34 {dimension_numbers = #tpu.dot_dimension_numbers<[1], [0], [0], [1], [0, 0, 1, 1], [], []>} : vector<32x32xbf16>, vector<32x8xbf16>, vector<32x8xf32> -> vector<32x8xf32>
    %157 = vector.shape_cast %156 : vector<32x8xf32> to vector<2x16x8xf32>
    %cst_35 = arith.constant 0.000000e+00 : f32
    %158 = vector.broadcast %cst_35 : f32 to vector<2x4x8xf32>
    %159 = tpu.concatenate %158, %157, %158 in 1 : vector<2x4x8xf32>, vector<2x16x8xf32>, vector<2x4x8xf32> -> vector<2x24x8xf32>
    %160 = vector.extract_strided_slice %159 {offsets = [0, 0, 0], sizes = [2, 16, 8], strides = [1, 1, 1]} : vector<2x24x8xf32> to vector<2x16x8xf32>
    %161 = vector.extract_strided_slice %159 {offsets = [0, 1, 0], sizes = [2, 16, 8], strides = [1, 1, 1]} : vector<2x24x8xf32> to vector<2x16x8xf32>
    %162 = vector.extract_strided_slice %159 {offsets = [0, 2, 0], sizes = [2, 16, 8], strides = [1, 1, 1]} : vector<2x24x8xf32> to vector<2x16x8xf32>
    %163 = vector.extract_strided_slice %159 {offsets = [0, 3, 0], sizes = [2, 16, 8], strides = [1, 1, 1]} : vector<2x24x8xf32> to vector<2x16x8xf32>
    %164 = vector.extract_strided_slice %159 {offsets = [0, 4, 0], sizes = [2, 16, 8], strides = [1, 1, 1]} : vector<2x24x8xf32> to vector<2x16x8xf32>
    %165 = vector.extract_strided_slice %159 {offsets = [0, 5, 0], sizes = [2, 16, 8], strides = [1, 1, 1]} : vector<2x24x8xf32> to vector<2x16x8xf32>
    %166 = vector.extract_strided_slice %159 {offsets = [0, 6, 0], sizes = [2, 16, 8], strides = [1, 1, 1]} : vector<2x24x8xf32> to vector<2x16x8xf32>
    %167 = vector.extract_strided_slice %159 {offsets = [0, 7, 0], sizes = [2, 16, 8], strides = [1, 1, 1]} : vector<2x24x8xf32> to vector<2x16x8xf32>
    %168 = vector.extract_strided_slice %159 {offsets = [0, 8, 0], sizes = [2, 16, 8], strides = [1, 1, 1]} : vector<2x24x8xf32> to vector<2x16x8xf32>
    %169 = vector.extract_strided_slice %151 {offsets = [0, 0, 0], sizes = [2, 1, 32], strides = [1, 1, 1]} : vector<2x16x32xf32> to vector<2x1x32xf32>
    %170 = vector.extract_strided_slice %151 {offsets = [0, 15, 0], sizes = [2, 1, 32], strides = [1, 1, 1]} : vector<2x16x32xf32> to vector<2x1x32xf32>
    %171 = tpu.concatenate %169, %151, %170 in 1 : vector<2x1x32xf32>, vector<2x16x32xf32>, vector<2x1x32xf32> -> vector<2x18x32xf32>
    %172 = vector.extract_strided_slice %171 {offsets = [0, 0, 0], sizes = [2, 16, 32], strides = [1, 1, 1]} : vector<2x18x32xf32> to vector<2x16x32xf32>
    %173 = arith.maximumf %151, %172 : vector<2x16x32xf32>
    %174 = vector.extract_strided_slice %171 {offsets = [0, 2, 0], sizes = [2, 16, 32], strides = [1, 1, 1]} : vector<2x18x32xf32> to vector<2x16x32xf32>
    %175 = arith.maximumf %173, %174 : vector<2x16x32xf32>
    %176 = tpu.concatenate %160, %161, %162, %163, %164, %165, %166, %167, %168, %175 in 2 : vector<2x16x8xf32>, vector<2x16x8xf32>, vector<2x16x8xf32>, vector<2x16x8xf32>, vector<2x16x8xf32>, vector<2x16x8xf32>, vector<2x16x8xf32>, vector<2x16x8xf32>, vector<2x16x8xf32>, vector<2x16x32xf32> -> vector<2x16x104xf32>
    %c576 = arith.constant 576 : index
    %c0_36 = arith.constant 0 : index
    %177 = vector.load %arg2[%c576, %c0_36] : memref<944x32xbf16, #tpu.memory_space<vmem>>, vector<104x32xbf16>
    %178 = vector.shape_cast %176 : vector<2x16x104xf32> to vector<32x104xf32>
    %179 = arith.truncf %178 : vector<32x104xf32> to vector<32x104xbf16>
    %cst_37 = arith.constant dense<0.000000e+00> : vector<32x32xf32>
    %180 = tpu.matmul %179, %177, %cst_37 {dimension_numbers = #tpu.dot_dimension_numbers<[1], [0], [0], [1], [0, 0, 1, 1], [], []>} : vector<32x104xbf16>, vector<104x32xbf16>, vector<32x32xf32> -> vector<32x32xf32>
    %181 = vector.shape_cast %180 : vector<32x32xf32> to vector<2x16x32xf32>
    %182 = vector.extract_strided_slice %1 {offsets = [4, 0], sizes = [1, 32], strides = [1, 1]} : vector<6x32xf32> to vector<1x32xf32>
    %183 = vector.shape_cast %182 : vector<1x32xf32> to vector<1x1x32xf32>
    %184 = vector.broadcast %183 : vector<1x1x32xf32> to vector<2x16x32xf32>
    %185 = arith.addf %181, %184 : vector<2x16x32xf32>
    %cst_38 = arith.constant 0.000000e+00 : f32
    %186 = vector.broadcast %cst_38 : f32 to vector<2x16x32xf32>
    %187 = arith.maximumf %185, %186 : vector<2x16x32xf32>
    %c880_39 = arith.constant 880 : index
    %c0_40 = arith.constant 0 : index
    %188 = vector.load %arg2[%c880_39, %c0_40] : memref<944x32xbf16, #tpu.memory_space<vmem>>, vector<32x32xbf16>
    %189 = vector.extract_strided_slice %188 {offsets = [0, 8], sizes = [32, 8], strides = [1, 1]} : vector<32x32xbf16> to vector<32x8xbf16>
    %190 = vector.shape_cast %187 : vector<2x16x32xf32> to vector<32x32xf32>
    %191 = arith.truncf %190 : vector<32x32xf32> to vector<32x32xbf16>
    %cst_41 = arith.constant dense<0.000000e+00> : vector<32x8xf32>
    %192 = tpu.matmul %191, %189, %cst_41 {dimension_numbers = #tpu.dot_dimension_numbers<[1], [0], [0], [1], [0, 0, 1, 1], [], []>} : vector<32x32xbf16>, vector<32x8xbf16>, vector<32x8xf32> -> vector<32x8xf32>
    %193 = vector.shape_cast %192 : vector<32x8xf32> to vector<2x16x8xf32>
    %cst_42 = arith.constant 0.000000e+00 : f32
    %194 = vector.broadcast %cst_42 : f32 to vector<2x4x8xf32>
    %195 = tpu.concatenate %194, %193, %194 in 1 : vector<2x4x8xf32>, vector<2x16x8xf32>, vector<2x4x8xf32> -> vector<2x24x8xf32>
    %196 = vector.extract_strided_slice %195 {offsets = [0, 0, 0], sizes = [2, 16, 8], strides = [1, 1, 1]} : vector<2x24x8xf32> to vector<2x16x8xf32>
    %197 = vector.extract_strided_slice %195 {offsets = [0, 1, 0], sizes = [2, 16, 8], strides = [1, 1, 1]} : vector<2x24x8xf32> to vector<2x16x8xf32>
    %198 = vector.extract_strided_slice %195 {offsets = [0, 2, 0], sizes = [2, 16, 8], strides = [1, 1, 1]} : vector<2x24x8xf32> to vector<2x16x8xf32>
    %199 = vector.extract_strided_slice %195 {offsets = [0, 3, 0], sizes = [2, 16, 8], strides = [1, 1, 1]} : vector<2x24x8xf32> to vector<2x16x8xf32>
    %200 = vector.extract_strided_slice %195 {offsets = [0, 4, 0], sizes = [2, 16, 8], strides = [1, 1, 1]} : vector<2x24x8xf32> to vector<2x16x8xf32>
    %201 = vector.extract_strided_slice %195 {offsets = [0, 5, 0], sizes = [2, 16, 8], strides = [1, 1, 1]} : vector<2x24x8xf32> to vector<2x16x8xf32>
    %202 = vector.extract_strided_slice %195 {offsets = [0, 6, 0], sizes = [2, 16, 8], strides = [1, 1, 1]} : vector<2x24x8xf32> to vector<2x16x8xf32>
    %203 = vector.extract_strided_slice %195 {offsets = [0, 7, 0], sizes = [2, 16, 8], strides = [1, 1, 1]} : vector<2x24x8xf32> to vector<2x16x8xf32>
    %204 = vector.extract_strided_slice %195 {offsets = [0, 8, 0], sizes = [2, 16, 8], strides = [1, 1, 1]} : vector<2x24x8xf32> to vector<2x16x8xf32>
    %205 = vector.extract_strided_slice %187 {offsets = [0, 0, 0], sizes = [2, 1, 32], strides = [1, 1, 1]} : vector<2x16x32xf32> to vector<2x1x32xf32>
    %206 = vector.extract_strided_slice %187 {offsets = [0, 15, 0], sizes = [2, 1, 32], strides = [1, 1, 1]} : vector<2x16x32xf32> to vector<2x1x32xf32>
    %207 = tpu.concatenate %205, %187, %206 in 1 : vector<2x1x32xf32>, vector<2x16x32xf32>, vector<2x1x32xf32> -> vector<2x18x32xf32>
    %208 = vector.extract_strided_slice %207 {offsets = [0, 0, 0], sizes = [2, 16, 32], strides = [1, 1, 1]} : vector<2x18x32xf32> to vector<2x16x32xf32>
    %209 = arith.maximumf %187, %208 : vector<2x16x32xf32>
    %210 = vector.extract_strided_slice %207 {offsets = [0, 2, 0], sizes = [2, 16, 32], strides = [1, 1, 1]} : vector<2x18x32xf32> to vector<2x16x32xf32>
    %211 = arith.maximumf %209, %210 : vector<2x16x32xf32>
    %212 = tpu.concatenate %196, %197, %198, %199, %200, %201, %202, %203, %204, %211, %115 in 2 : vector<2x16x8xf32>, vector<2x16x8xf32>, vector<2x16x8xf32>, vector<2x16x8xf32>, vector<2x16x8xf32>, vector<2x16x8xf32>, vector<2x16x8xf32>, vector<2x16x8xf32>, vector<2x16x8xf32>, vector<2x16x32xf32>, vector<2x16x32xf32> -> vector<2x16x136xf32>
    %c712 = arith.constant 712 : index
    %c0_43 = arith.constant 0 : index
    %213 = vector.load %arg2[%c712, %c0_43] : memref<944x32xbf16, #tpu.memory_space<vmem>>, vector<136x32xbf16>
    %214 = vector.shape_cast %212 : vector<2x16x136xf32> to vector<32x136xf32>
    %215 = arith.truncf %214 : vector<32x136xf32> to vector<32x136xbf16>
    %cst_44 = arith.constant dense<0.000000e+00> : vector<32x32xf32>
    %216 = tpu.matmul %215, %213, %cst_44 {dimension_numbers = #tpu.dot_dimension_numbers<[1], [0], [0], [1], [0, 0, 1, 1], [], []>} : vector<32x136xbf16>, vector<136x32xbf16>, vector<32x32xf32> -> vector<32x32xf32>
    %217 = vector.shape_cast %216 : vector<32x32xf32> to vector<2x16x32xf32>
    %218 = vector.extract_strided_slice %1 {offsets = [5, 0], sizes = [1, 32], strides = [1, 1]} : vector<6x32xf32> to vector<1x32xf32>
    %219 = vector.shape_cast %218 : vector<1x32xf32> to vector<1x1x32xf32>
    %220 = vector.broadcast %219 : vector<1x1x32xf32> to vector<2x16x32xf32>
    %221 = arith.addf %217, %220 : vector<2x16x32xf32>
    %cst_45 = arith.constant 0.000000e+00 : f32
    %222 = vector.broadcast %cst_45 : f32 to vector<2x16x32xf32>
    %223 = arith.maximumf %221, %222 : vector<2x16x32xf32>
    %cst_46 = arith.constant dense<0.000000e+00> : vector<2x32xf32>
    %224 = vector.multi_reduction <add>, %223, %cst_46 [1] : vector<2x16x32xf32> to vector<2x32xf32>
    %225 = arith.truncf %224 : vector<2x32xf32> to vector<2x32xbf16>
    %c912 = arith.constant 912 : index
    %c0_47 = arith.constant 0 : index
    %226 = vector.load %arg2[%c912, %c0_47] : memref<944x32xbf16, #tpu.memory_space<vmem>>, vector<32x32xbf16>
    %cst_48 = arith.constant dense<0.000000e+00> : vector<2x32xf32>
    %227 = tpu.matmul %225, %226, %cst_48 {dimension_numbers = #tpu.dot_dimension_numbers<[1], [0], [0], [1], [0, 0, 1, 1], [], []>} : vector<2x32xbf16>, vector<32x32xbf16>, vector<2x32xf32> -> vector<2x32xf32>
    %228 = vector.broadcast %2 : vector<1x32xf32> to vector<2x32xf32>
    %229 = arith.addf %227, %228 : vector<2x32xf32>
    %c0_49 = arith.constant 0 : index
    %c0_50 = arith.constant 0 : index
    %230 = vector.load %arg4[%c0_49, %c0_50] : memref<2x32xf32, #tpu.memory_space<vmem>>, vector<2x32xf32>
    tpu.vector_store %arg4[%c0_49, %c0_50], %229 {strides = array<i32>} : memref<2x32xf32, #tpu.memory_space<vmem>>, vector<2x32xf32>,
    return
  }
  func.func @transform_0(%arg0: i32) -> (i32, i32, i32) {
    %c0_i32 = arith.constant 0 : i32
    %c0_i32_0 = arith.constant 0 : i32
    %c0_i32_1 = arith.constant 0 : i32
    %c0_i32_2 = arith.constant 0 : i32
    return %c0_i32, %c0_i32_0, %c0_i32_1 : i32, i32, i32
  }
  func.func @transform_1(%arg0: i32) -> (i32, i32) {
    %c0_i32 = arith.constant 0 : i32
    %c0_i32_0 = arith.constant 0 : i32
    %c0_i32_1 = arith.constant 0 : i32
    return %c0_i32, %c0_i32_0 : i32, i32
  }
  func.func @transform_2(%arg0: i32) -> (i32, i32) {
    %c0_i32 = arith.constant 0 : i32
    %c0_i32_0 = arith.constant 0 : i32
    %c0_i32_1 = arith.constant 0 : i32
    return %c0_i32, %c0_i32_0 : i32, i32
  }
  func.func @transform_3(%arg0: i32) -> (i32, i32) {
    %c0_i32 = arith.constant 0 : i32
    %c0_i32_0 = arith.constant 0 : i32
    %c0_i32_1 = arith.constant 0 : i32
    return %c0_i32, %c0_i32_0 : i32, i32
  }
}

</mosaic_0001>

<llo_original>
// kernel: tpu_custom_call.1
$region0: #{tpu_custom_call.1}
  #allocation0 [shape = 'u32[]', space=smem, size = 0x4, offset = 0x4, fixed_abs, tag = 'smem constant byte address 0x4 - core index']
  #allocation1 [shape = 'u32[72,128]{1,0:T(1,128)}', space=vmem, size = 0x9000, scoped, tag = 'internal scratch']
  %s0 = inlined_call_operand.vmem [shape: bf16[2,16,32], index: 0, kind: input, shape index: {}]
  %s1 = inlined_call_operand.vmem [shape: bf16[944,32], index: 1, kind: input, shape index: {}]
  %s2 = inlined_call_operand.vmem [shape: f32[8,32], index: 2, kind: input, shape index: {}]
  %s3 = inlined_call_operand.hbm [shape: f32[2,32], index: 3, kind: output, shape index: {}]
  %s4 = sld [smem:[#allocation0]]
  $region22: #{tpu_custom_call.1} parent=0
    _
  %s6 = ssub.s32 1, %s4
  %s7 = scalar_select 0, %s6, %s4
  $region1: #{tpu_custom_call.1} parent=0
    #allocation2 [shape = 'u8[1024]{0}', space=vmem, size = 0x400, scoped, tag = 'output window, operand 0, single buffered']
    #allocation3 [shape = 's32[1]{0}', space=sflag, size = 0x4, scoped, tag = 'scoped memory for tpu_custom_call.1']
    %8 = vsyncpa [#allocation3], 0
    // Predicated region
    $region2: #{tpu_custom_call.1} parent=1 // pred_check
      _
    $region3: #{tpu_custom_call.1} parent=1 // pred_check_branch
      %10 = sbr.rel (0) target = $region5
    $region4: #{tpu_custom_call.1} parent=1 // pred_region
      _
    $region5: #{tpu_custom_call.1} parent=1 // pred_fallthru
      _
    // Predicated region
    $region6: #{tpu_custom_call.1} parent=1 // pred_check
      _
    $region7: #{tpu_custom_call.1} parent=1 // pred_check_branch
      %12 = sbr.rel (0) target = $region9
    $region8: #{tpu_custom_call.1} parent=1 // pred_region
      _
    $region9: #{tpu_custom_call.1} parent=1 // pred_fallthru
      _
    // Predicated region
    $region10: #{tpu_custom_call.1} parent=1 // pred_check
      _
    $region11: #{tpu_custom_call.1} parent=1 // pred_check_branch
      %14 = sbr.rel (0) target = $region13
    $region12: #{tpu_custom_call.1} parent=1 // pred_region
      _
    $region13: #{tpu_custom_call.1} parent=1 // pred_fallthru
      _
    %v16 = vld [vmem:[%s2] sm:$0xff]
    %v17 = vld [vmem:[%s0] sm:$0xf]
    %v18 = vld [vmem:[%s0 + $0x4] sm:$0xf]
    %v19 = vld [vmem:[%s0 + $0x8] sm:$0xf]
    %v20 = vld [vmem:[%s0 + $0xc] sm:$0xf]
    %v21 = vld [vmem:[%s1] sm:$0xf]
    %v22 = vld [vmem:[%s1 + $0x4] sm:$0xf]
    %v23 = vld [vmem:[%s1 + $0x8] sm:$0xf]
    %v24 = vld [vmem:[%s1 + $0xc] sm:$0xf]
    %v29 = vunpack.c.l.b16 %v17
    %v30 = vunpack.c.l.b16 %v18
    %v31 = vunpack.c.l.b16 %v19
    %v32 = vunpack.c.l.b16 %v20
    %v33 = vpack.c.b16 %v30, %v29
    %v34 = vpack.c.b16 %v32, %v31
    %v39 = vunpack.c.l.b16 %v21
    %v40 = vunpack.c.l.b16 %v22
    %v41 = vunpack.c.l.b16 %v23
    %v42 = vunpack.c.l.b16 %v24
    %v43 = vpack.c.b16 %v40, %v39
    %v44 = vpack.c.b16 %v42, %v41
    %vm47 = vcmask 261120
    %v49 = vsel %vm47, %v33, 0
    %v52 = vsel %vm47, %v34, 0
    %54 = vmatpush.bf16.msra.mxu0 0
    %55 = vmatpush.bf16.msra.mxu0 0
    %56 = vmatpush.bf16.msra.mxu0 0
    %57 = vmatpush.bf16.msra.mxu0 0
    %58 = vmatpush.bf16.msra.mxu0 0
    %59 = vmatpush.bf16.msra.mxu0 0
    %60 = vmatpush.bf16.msra.mxu0 %v44
    %61 = vmatpush.bf16.msra.mxu0 %v43
    %62 = vmatmul.bf16.gmra.mxu0 %v49
    %v63 = vpop.f32.mrf.mxu0
    %v64 = vadd.f32 0.0, %v63
    %v65 = vpop.f32.mrf.mxu0
    %v66 = vadd.f32 0.0, %v65
    %67 = vmatmul.bf16.gmra.mxu0 %v52
    %v68 = vpop.f32.mrf.mxu0
    %v69 = vadd.f32 0.0, %v68
    %v70 = vpop.f32.mrf.mxu0
    %v71 = vadd.f32 0.0, %v70
    %72 = vdwg.mxu0
    %v73 = vld [vmem:[%s1 + $0x1a8] sm:$0xf]
    %v74 = vld [vmem:[%s1 + $0x1ac] sm:$0xf]
    %v75 = vld [vmem:[%s1 + $0x1b0] sm:$0xf]
    %v76 = vld [vmem:[%s1 + $0x1b4] sm:$0xf]
    %v77 = vpack.c.bf16 %v66, %v64
    %v78 = vpack.c.bf16 %v71, %v69
    %v83 = vunpack.c.l.b16 %v73
    %v84 = vunpack.c.l.b16 %v74
    %v85 = vunpack.c.l.b16 %v75
    %v86 = vunpack.c.l.b16 %v76
    %v87 = vpack.c.b16 %v84, %v83
    %v88 = vpack.c.b16 %v86, %v85
    %v92 = vsel %vm47, %v77, 0
    %v95 = vsel %vm47, %v78, 0
    %97 = vmatpush.bf16.msra.mxu0 0
    %98 = vmatpush.bf16.msra.mxu0 0
    %99 = vmatpush.bf16.msra.mxu0 0
    %100 = vmatpush.bf16.msra.mxu0 0
    %101 = vmatpush.bf16.msra.mxu0 0
    %102 = vmatpush.bf16.msra.mxu0 0
    %103 = vmatpush.bf16.msra.mxu0 %v88
    %104 = vmatpush.bf16.msra.mxu0 %v87
    %105 = vmatmul.bf16.gmra.mxu0 %v92
    %v106 = vpop.f32.mrf.mxu0
    %v107 = vadd.f32 0.0, %v106
    %v108 = vpop.f32.mrf.mxu0
    %v109 = vadd.f32 0.0, %v108
    %110 = vmatmul.bf16.gmra.mxu0 %v95
    %v111 = vpop.f32.mrf.mxu0
    %v112 = vadd.f32 0.0, %v111
    %v113 = vpop.f32.mrf.mxu0
    %v114 = vadd.f32 0.0, %v113
    %115 = vdwg.mxu0
    %vm120 = vcmask 1043456
    %v121 = vrot.slane %v107, 4
    %v122 = vrot.slane %v109, 4
    %v123 = vsel %vm120, %v121, %v122
    %v124 = vrot.slane %v112, 4
    %v125 = vrot.slane %v114, 4
    %v126 = vsel %vm120, %v124, %v125
    %v133 = vsel %vm120, 0.0, %v121
    %v134 = vsel %vm120, 0.0, %v124
    %v135 = vsel %vm120, %v122, 0.0
    %v136 = vsel %vm120, %v125, 0.0
    %vm141 = vcmask 1040384
    %v142 = vrot.slane %v64, 7
    %v143 = vrot.slane %v66, 7
    %v144 = vsel %vm141, %v142, %v143
    %v145 = vrot.slane %v69, 7
    %v146 = vrot.slane %v71, 7
    %v147 = vsel %vm141, %v145, %v146
    %v154 = vrot.slane %v66, 6
    %v155 = vrot.slane %v71, 6
    %v158 = vsel %vm141, %v64, %v142
    %v159 = vsel %vm141, %v69, %v145
    %v160 = vsel %vm141, %v143, %v154
    %v161 = vsel %vm141, %v146, %v155
    %v162 = vmax.f32 %v64, %v158
    %v163 = vmax.f32 %v66, %v144
    %v164 = vmax.f32 %v69, %v159
    %v165 = vmax.f32 %v71, %v147
    %vm170 = vcmask 1045504
    %v171 = vrot.slane %v158, 2
    %v172 = vrot.slane %v144, 2
    %v173 = vsel %vm170, %v171, %v172
    %v174 = vrot.slane %v160, 2
    %v175 = vsel %vm170, %v172, %v174
    %v176 = vrot.slane %v159, 2
    %v177 = vrot.slane %v147, 2
    %v178 = vsel %vm170, %v176, %v177
    %v179 = vrot.slane %v161, 2
    %v180 = vsel %vm170, %v177, %v179
    %v185 = vmax.f32 %v162, %v173
    %v186 = vmax.f32 %v163, %v175
    %v187 = vmax.f32 %v164, %v178
    %v188 = vmax.f32 %v165, %v180
    %vm193 = vcmask 1046528
    %v194 = vrot.slane %v133, 1
    %v195 = vrot.slane %v123, 1
    %v196 = vsel %vm193, %v194, %v195
    %v197 = vrot.slane %v135, 1
    %v198 = vsel %vm193, %v195, %v197
    %v199 = vrot.slane %v134, 1
    %v200 = vrot.slane %v126, 1
    %v201 = vsel %vm193, %v199, %v200
    %v202 = vrot.slane %v136, 1
    %v203 = vsel %vm193, %v200, %v202
    %204 = vrot.lane.b32.xlu0 %v196, 8
    %v205 = vpop.permute.xlu0 %204
    %206 = vrot.lane.b32.xlu0 %v198, 8
    %v207 = vpop.permute.xlu0 %206
    %208 = vrot.lane.b32.xlu0 %v201, 8
    %v209 = vpop.permute.xlu0 %208
    %210 = vrot.lane.b32.xlu0 %v203, 8
    %v211 = vpop.permute.xlu0 %210
    %v216 = vrot.slane %v133, 2
    %v217 = vrot.slane %v123, 2
    %v218 = vsel %vm170, %v216, %v217
    %v219 = vrot.slane %v135, 2
    %v220 = vsel %vm170, %v217, %v219
    %v221 = vrot.slane %v134, 2
    %v222 = vrot.slane %v126, 2
    %v223 = vsel %vm170, %v221, %v222
    %v224 = vrot.slane %v136, 2
    %v225 = vsel %vm170, %v222, %v224
    %226 = vrot.lane.b32.xlu0 %v218, 16
    %v227 = vpop.permute.xlu0 %226
    %228 = vrot.lane.b32.xlu0 %v220, 16
    %v229 = vpop.permute.xlu0 %228
    %230 = vrot.lane.b32.xlu0 %v223, 16
    %v231 = vpop.permute.xlu0 %230
    %232 = vrot.lane.b32.xlu0 %v225, 16
    %v233 = vpop.permute.xlu0 %232
    %vm238 = vcmask 1044480
    %v239 = vrot.slane %v133, 3
    %v240 = vrot.slane %v123, 3
    %v241 = vsel %vm238, %v239, %v240
    %v242 = vrot.slane %v135, 3
    %v243 = vsel %vm238, %v240, %v242
    %v244 = vrot.slane %v134, 3
    %v245 = vrot.slane %v126, 3
    %v246 = vsel %vm238, %v244, %v245
    %v247 = vrot.slane %v136, 3
    %v248 = vsel %vm238, %v245, %v247
    %249 = vrot.lane.b32.xlu0 %v241, 24
    %v250 = vpop.permute.xlu0 %249
    %251 = vrot.lane.b32.xlu0 %v243, 24
    %v252 = vpop.permute.xlu0 %251
    %253 = vrot.lane.b32.xlu0 %v246, 24
    %v254 = vpop.permute.xlu0 %253
    %255 = vrot.lane.b32.xlu0 %v248, 24
    %v256 = vpop.permute.xlu0 %255
    %v261 = vrot.slane %v133, 4
    %v262 = vrot.slane %v123, 4
    %v263 = vsel %vm120, %v261, %v262
    %v264 = vrot.slane %v135, 4
    %v265 = vsel %vm120, %v262, %v264
    %v266 = vrot.slane %v134, 4
    %v267 = vrot.slane %v126, 4
    %v268 = vsel %vm120, %v266, %v267
    %v269 = vrot.slane %v136, 4
    %v270 = vsel %vm120, %v267, %v269
    %271 = vrot.lane.b32.xlu0 %v263, 32
    %v272 = vpop.permute.xlu0 %271
    %273 = vrot.lane.b32.xlu0 %v265, 32
    %v274 = vpop.permute.xlu0 %273
    %275 = vrot.lane.b32.xlu0 %v268, 32
    %v276 = vpop.permute.xlu0 %275
    %277 = vrot.lane.b32.xlu0 %v270, 32
    %v278 = vpop.permute.xlu0 %277
    %vm283 = vcmask 1042432
    %v284 = vrot.slane %v133, 5
    %v285 = vrot.slane %v123, 5
    %v286 = vsel %vm283, %v284, %v285
    %v287 = vrot.slane %v135, 5
    %v288 = vsel %vm283, %v285, %v287
    %v289 = vrot.slane %v134, 5
    %v290 = vrot.slane %v126, 5
    %v291 = vsel %vm283, %v289, %v290
    %v292 = vrot.slane %v136, 5
    %v293 = vsel %vm283, %v290, %v292
    %294 = vrot.lane.b32.xlu0 %v286, 40
    %v295 = vpop.permute.xlu0 %294
    %296 = vrot.lane.b32.xlu0 %v288, 40
    %v297 = vpop.permute.xlu0 %296
    %298 = vrot.lane.b32.xlu0 %v291, 40
    %v299 = vpop.permute.xlu0 %298
    %300 = vrot.lane.b32.xlu0 %v293, 40
    %v301 = vpop.permute.xlu0 %300
    %vm306 = vcmask 1041408
    %v307 = vrot.slane %v133, 6
    %v308 = vrot.slane %v123, 6
    %v309 = vsel %vm306, %v307, %v308
    %v310 = vrot.slane %v135, 6
    %v311 = vsel %vm306, %v308, %v310
    %v312 = vrot.slane %v134, 6
    %v313 = vrot.slane %v126, 6
    %v314 = vsel %vm306, %v312, %v313
    %v315 = vrot.slane %v136, 6
    %v316 = vsel %vm306, %v313, %v315
    %317 = vrot.lane.b32.xlu0 %v309, 48
    %v318 = vpop.permute.xlu0 %317
    %319 = vrot.lane.b32.xlu0 %v311, 48
    %v320 = vpop.permute.xlu0 %319
    %321 = vrot.lane.b32.xlu0 %v314, 48
    %v322 = vpop.permute.xlu0 %321
    %323 = vrot.lane.b32.xlu0 %v316, 48
    %v324 = vpop.permute.xlu0 %323
    %v329 = vrot.slane %v133, 7
    %v330 = vrot.slane %v123, 7
    %v331 = vsel %vm141, %v329, %v330
    %v332 = vrot.slane %v135, 7
    %v333 = vsel %vm141, %v330, %v332
    %v334 = vrot.slane %v134, 7
    %v335 = vrot.slane %v126, 7
    %v336 = vsel %vm141, %v334, %v335
    %v337 = vrot.slane %v136, 7
    %v338 = vsel %vm141, %v335, %v337
    %339 = vrot.lane.b32.xlu0 %v331, 56
    %v340 = vpop.permute.xlu0 %339
    %341 = vrot.lane.b32.xlu0 %v333, 56
    %v342 = vpop.permute.xlu0 %341
    %343 = vrot.lane.b32.xlu0 %v336, 56
    %v344 = vpop.permute.xlu0 %343
    %345 = vrot.lane.b32.xlu0 %v338, 56
    %v346 = vpop.permute.xlu0 %345
    %351 = vrot.lane.b32.xlu0 %v123, 64
    %v352 = vpop.permute.xlu0 %351
    %353 = vrot.lane.b32.xlu0 %v135, 64
    %v354 = vpop.permute.xlu0 %353
    %355 = vrot.lane.b32.xlu0 %v126, 64
    %v356 = vpop.permute.xlu0 %355
    %357 = vrot.lane.b32.xlu0 %v136, 64
    %v358 = vpop.permute.xlu0 %357
    %367 = vrot.lane.b32.xlu0 %v185, 72
    %v368 = vpop.permute.xlu0 %367
    %369 = vrot.lane.b32.xlu0 %v186, 72
    %v370 = vpop.permute.xlu0 %369
    %371 = vrot.lane.b32.xlu0 %v187, 72
    %v372 = vpop.permute.xlu0 %371
    %373 = vrot.lane.b32.xlu0 %v188, 72
    %v374 = vpop.permute.xlu0 %373
    %vm379 = vcmask 64512
    %v380 = vsel %vm379, %v133, %v205
    %v381 = vsel %vm379, %v123, %v207
    %v382 = vsel %vm379, %v134, %v209
    %v383 = vsel %vm379, %v126, %v211
    %vm384 = vcmask 130048
    %v385 = vsel %vm384, %v380, %v227
    %v386 = vsel %vm384, %v381, %v229
    %v387 = vsel %vm384, %v382, %v231
    %v388 = vsel %vm384, %v383, %v233
    %vm389 = vcmask 195584
    %v390 = vsel %vm389, %v385, %v250
    %v391 = vsel %vm389, %v386, %v252
    %v392 = vsel %vm389, %v387, %v254
    %v393 = vsel %vm389, %v388, %v256
    %v394 = vsel %vm47, %v390, %v272
    %v395 = vsel %vm47, %v391, %v274
    %v396 = vsel %vm47, %v392, %v276
    %v397 = vsel %vm47, %v393, %v278
    %vm398 = vcmask 326656
    %v399 = vsel %vm398, %v394, %v295
    %v400 = vsel %vm398, %v395, %v297
    %v401 = vsel %vm398, %v396, %v299
    %v402 = vsel %vm398, %v397, %v301
    %vm403 = vcmask 392192
    %v404 = vsel %vm403, %v399, %v318
    %v405 = vsel %vm403, %v400, %v320
    %v406 = vsel %vm403, %v401, %v322
    %v407 = vsel %vm403, %v402, %v324
    %vm408 = vcmask 457728
    %v409 = vsel %vm408, %v404, %v340
    %v410 = vsel %vm408, %v405, %v342
    %v411 = vsel %vm408, %v406, %v344
    %v412 = vsel %vm408, %v407, %v346
    %vm413 = vcmask 523264
    %v414 = vsel %vm413, %v409, %v352
    %v415 = vsel %vm413, %v410, %v354
    %v416 = vsel %vm413, %v411, %v356
    %v417 = vsel %vm413, %v412, %v358
    %vm418 = vcmask 588800
    %v419 = vsel %vm418, %v414, %v368
    %v420 = vsel %vm418, %v415, %v370
    %v421 = vsel %vm418, %v416, %v372
    %v422 = vsel %vm418, %v417, %v374
    %v423 = vld [vmem:[%s1 + $0x10] sm:$0xf]
    %v424 = vld [vmem:[%s1 + $0x14] sm:$0xf]
    %v425 = vld [vmem:[%s1 + $0x18] sm:$0xf]
    %v426 = vld [vmem:[%s1 + $0x1c] sm:$0xf]
    %v427 = vld [vmem:[%s1 + $0x20] sm:$0xf]
    %v428 = vld [vmem:[%s1 + $0x24] sm:$0xf]
    %v429 = vld [vmem:[%s1 + $0x28] sm:$0xf]
    %v430 = vld [vmem:[%s1 + $0x2c] sm:$0xf]
    %v431 = vld [vmem:[%s1 + $0x30] sm:$0xf]
    %v432 = vld [vmem:[%s1 + $0x34] sm:$0xf]
    %v433 = vld [vmem:[%s1 + $0x38] sm:$0xf]
    %v434 = vld [vmem:[%s1 + $0x3c] sm:$0xf]
    %v435 = vld [vmem:[%s1 + $0x40] sm:$0xf]
    %v436 = vpack.c.bf16 %v420, %v419
    %v437 = vpack.c.bf16 %v422, %v421
    %v451 = vunpack.c.l.b16 %v423
    %v452 = vunpack.c.l.b16 %v424
    %v453 = vunpack.c.l.b16 %v425
    %v454 = vunpack.c.l.b16 %v426
    %v455 = vunpack.c.l.b16 %v427
    %v456 = vunpack.c.l.b16 %v428
    %v457 = vunpack.c.l.b16 %v429
    %v458 = vunpack.c.l.b16 %v430
    %v459 = vunpack.c.l.b16 %v431
    %v460 = vunpack.c.l.b16 %v432
    %v461 = vunpack.c.l.b16 %v433
    %v462 = vunpack.c.l.b16 %v434
    %v463 = vunpack.c.l.b16 %v435
    %v464 = vpack.c.b16 %v452, %v451
    %v465 = vpack.c.b16 %v454, %v453
    %v466 = vpack.c.b16 %v456, %v455
    %v467 = vpack.c.b16 %v458, %v457
    %v468 = vpack.c.b16 %v460, %v459
    %v469 = vpack.c.b16 %v462, %v461
    %v470 = vpack.c.b16 %v463, %v463
    %vm477 = vcmask 850944
    %v479 = vsel %vm477, %v436, 0
    %v482 = vsel %vm477, %v437, 0
    %v485 = vsel %vm120, %v470, 0
    %487 = vmatpush.bf16.msra.mxu0 0
    %488 = vmatpush.bf16.msra.mxu0 %v485
    %489 = vmatpush.bf16.msra.mxu0 %v469
    %490 = vmatpush.bf16.msra.mxu0 %v468
    %491 = vmatpush.bf16.msra.mxu0 %v467
    %492 = vmatpush.bf16.msra.mxu0 %v466
    %493 = vmatpush.bf16.msra.mxu0 %v465
    %494 = vmatpush.bf16.msra.mxu0 %v464
    %495 = vmatmul.bf16.gmra.mxu0 %v479
    %v496 = vpop.f32.mrf.mxu0
    %v497 = vadd.f32 0.0, %v496
    %v498 = vpop.f32.mrf.mxu0
    %v499 = vadd.f32 0.0, %v498
    %500 = vmatmul.bf16.gmra.mxu0 %v482
    %v501 = vpop.f32.mrf.mxu0
    %v502 = vadd.f32 0.0, %v501
    %v503 = vpop.f32.mrf.mxu0
    %v504 = vadd.f32 0.0, %v503
    %505 = vdwg.mxu0
    %v506 = vperm.slane %v16, 0
    %v507 = vadd.f32 %v497, %v506
    %v508 = vadd.f32 %v499, %v506
    %v509 = vadd.f32 %v502, %v506
    %v510 = vadd.f32 %v504, %v506
    %v511 = vmax.f32 %v507, 0.0
    %v512 = vmax.f32 %v508, 0.0
    %v513 = vmax.f32 %v509, 0.0
    %v514 = vmax.f32 %v510, 0.0
    %v515 = vpack.c.bf16 %v512, %v511
    %v516 = vpack.c.bf16 %v514, %v513
    %517 = vrot.lane.b32.xlu0 %v87, 120
    %v518 = vpop.permute.xlu0 %517
    %519 = vrot.lane.b32.xlu0 %v88, 120
    %v520 = vpop.permute.xlu0 %519
    %v524 = vsel %vm47, %v515, 0
    %v527 = vsel %vm47, %v516, 0
    %529 = vmatpush.bf16.msra.mxu0 0
    %530 = vmatpush.bf16.msra.mxu0 0
    %531 = vmatpush.bf16.msra.mxu0 0
    %532 = vmatpush.bf16.msra.mxu0 0
    %533 = vmatpush.bf16.msra.mxu0 0
    %534 = vmatpush.bf16.msra.mxu0 0
    %535 = vmatpush.bf16.msra.mxu0 %v520
    %536 = vmatpush.bf16.msra.mxu0 %v518
    %537 = vmatmul.bf16.gmra.mxu0 %v524
    %v538 = vpop.f32.mrf.mxu0
    %v539 = vadd.f32 0.0, %v538
    %v540 = vpop.f32.mrf.mxu0
    %v541 = vadd.f32 0.0, %v540
    %542 = vmatmul.bf16.gmra.mxu0 %v527
    %v543 = vpop.f32.mrf.mxu0
    %v544 = vadd.f32 0.0, %v543
    %v545 = vpop.f32.mrf.mxu0
    %v546 = vadd.f32 0.0, %v545
    %547 = vdwg.mxu0
    %v552 = vrot.slane %v539, 4
    %v553 = vrot.slane %v541, 4
    %v554 = vsel %vm120, %v552, %v553
    %v555 = vrot.slane %v544, 4
    %v556 = vrot.slane %v546, 4
    %v557 = vsel %vm120, %v555, %v556
    %v564 = vsel %vm120, 0.0, %v552
    %v565 = vsel %vm120, 0.0, %v555
    %v566 = vsel %vm120, %v553, 0.0
    %v567 = vsel %vm120, %v556, 0.0
    %v572 = vrot.slane %v511, 7
    %v573 = vrot.slane %v512, 7
    %v574 = vsel %vm141, %v572, %v573
    %v575 = vrot.slane %v513, 7
    %v576 = vrot.slane %v514, 7
    %v577 = vsel %vm141, %v575, %v576
    %v584 = vrot.slane %v512, 6
    %v585 = vrot.slane %v514, 6
    %v588 = vsel %vm141, %v511, %v572
    %v589 = vsel %vm141, %v513, %v575
    %v590 = vsel %vm141, %v573, %v584
    %v591 = vsel %vm141, %v576, %v585
    %v592 = vmax.f32 %v511, %v588
    %v593 = vmax.f32 %v512, %v574
    %v594 = vmax.f32 %v513, %v589
    %v595 = vmax.f32 %v514, %v577
    %v600 = vrot.slane %v588, 2
    %v601 = vrot.slane %v574, 2
    %v602 = vsel %vm170, %v600, %v601
    %v603 = vrot.slane %v590, 2
    %v604 = vsel %vm170, %v601, %v603
    %v605 = vrot.slane %v589, 2
    %v606 = vrot.slane %v577, 2
    %v607 = vsel %vm170, %v605, %v606
    %v608 = vrot.slane %v591, 2
    %v609 = vsel %vm170, %v606, %v608
    %v614 = vmax.f32 %v592, %v602
    %v615 = vmax.f32 %v593, %v604
    %v616 = vmax.f32 %v594, %v607
    %v617 = vmax.f32 %v595, %v609
    %v622 = vrot.slane %v564, 1
    %v623 = vrot.slane %v554, 1
    %v624 = vsel %vm193, %v622, %v623
    %v625 = vrot.slane %v566, 1
    %v626 = vsel %vm193, %v623, %v625
    %v627 = vrot.slane %v565, 1
    %v628 = vrot.slane %v557, 1
    %v629 = vsel %vm193, %v627, %v628
    %v630 = vrot.slane %v567, 1
    %v631 = vsel %vm193, %v628, %v630
    %632 = vrot.lane.b32.xlu0 %v624, 8
    %v633 = vpop.permute.xlu0 %632
    %634 = vrot.lane.b32.xlu0 %v626, 8
    %v635 = vpop.permute.xlu0 %634
    %636 = vrot.lane.b32.xlu0 %v629, 8
    %v637 = vpop.permute.xlu0 %636
    %638 = vrot.lane.b32.xlu0 %v631, 8
    %v639 = vpop.permute.xlu0 %638
    %v644 = vrot.slane %v564, 2
    %v645 = vrot.slane %v554, 2
    %v646 = vsel %vm170, %v644, %v645
    %v647 = vrot.slane %v566, 2
    %v648 = vsel %vm170, %v645, %v647
    %v649 = vrot.slane %v565, 2
    %v650 = vrot.slane %v557, 2
    %v651 = vsel %vm170, %v649, %v650
    %v652 = vrot.slane %v567, 2
    %v653 = vsel %vm170, %v650, %v652
    %654 = vrot.lane.b32.xlu0 %v646, 16
    %v655 = vpop.permute.xlu0 %654
    %656 = vrot.lane.b32.xlu0 %v648, 16
    %v657 = vpop.permute.xlu0 %656
    %658 = vrot.lane.b32.xlu0 %v651, 16
    %v659 = vpop.permute.xlu0 %658
    %660 = vrot.lane.b32.xlu0 %v653, 16
    %v661 = vpop.permute.xlu0 %660
    %v666 = vrot.slane %v564, 3
    %v667 = vrot.slane %v554, 3
    %v668 = vsel %vm238, %v666, %v667
    %v669 = vrot.slane %v566, 3
    %v670 = vsel %vm238, %v667, %v669
    %v671 = vrot.slane %v565, 3
    %v672 = vrot.slane %v557, 3
    %v673 = vsel %vm238, %v671, %v672
    %v674 = vrot.slane %v567, 3
    %v675 = vsel %vm238, %v672, %v674
    %676 = vrot.lane.b32.xlu0 %v668, 24
    %v677 = vpop.permute.xlu0 %676
    %678 = vrot.lane.b32.xlu0 %v670, 24
    %v679 = vpop.permute.xlu0 %678
    %680 = vrot.lane.b32.xlu0 %v673, 24
    %v681 = vpop.permute.xlu0 %680
    %682 = vrot.lane.b32.xlu0 %v675, 24
    %v683 = vpop.permute.xlu0 %682
    %v688 = vrot.slane %v564, 4
    %v689 = vrot.slane %v554, 4
    %v690 = vsel %vm120, %v688, %v689
    %v691 = vrot.slane %v566, 4
    %v692 = vsel %vm120, %v689, %v691
    %v693 = vrot.slane %v565, 4
    %v694 = vrot.slane %v557, 4
    %v695 = vsel %vm120, %v693, %v694
    %v696 = vrot.slane %v567, 4
    %v697 = vsel %vm120, %v694, %v696
    %698 = vrot.lane.b32.xlu0 %v690, 32
    %v699 = vpop.permute.xlu0 %698
    %700 = vrot.lane.b32.xlu0 %v692, 32
    %v701 = vpop.permute.xlu0 %700
    %702 = vrot.lane.b32.xlu0 %v695, 32
    %v703 = vpop.permute.xlu0 %702
    %704 = vrot.lane.b32.xlu0 %v697, 32
    %v705 = vpop.permute.xlu0 %704
    %v710 = vrot.slane %v564, 5
    %v711 = vrot.slane %v554, 5
    %v712 = vsel %vm283, %v710, %v711
    %v713 = vrot.slane %v566, 5
    %v714 = vsel %vm283, %v711, %v713
    %v715 = vrot.slane %v565, 5
    %v716 = vrot.slane %v557, 5
    %v717 = vsel %vm283, %v715, %v716
    %v718 = vrot.slane %v567, 5
    %v719 = vsel %vm283, %v716, %v718
    %720 = vrot.lane.b32.xlu0 %v712, 40
    %v721 = vpop.permute.xlu0 %720
    %722 = vrot.lane.b32.xlu0 %v714, 40
    %v723 = vpop.permute.xlu0 %722
    %724 = vrot.lane.b32.xlu0 %v717, 40
    %v725 = vpop.permute.xlu0 %724
    %726 = vrot.lane.b32.xlu0 %v719, 40
    %v727 = vpop.permute.xlu0 %726
    %v732 = vrot.slane %v564, 6
    %v733 = vrot.slane %v554, 6
    %v734 = vsel %vm306, %v732, %v733
    %v735 = vrot.slane %v566, 6
    %v736 = vsel %vm306, %v733, %v735
    %v737 = vrot.slane %v565, 6
    %v738 = vrot.slane %v557, 6
    %v739 = vsel %vm306, %v737, %v738
    %v740 = vrot.slane %v567, 6
    %v741 = vsel %vm306, %v738, %v740
    %742 = vrot.lane.b32.xlu0 %v734, 48
    %v743 = vpop.permute.xlu0 %742
    %744 = vrot.lane.b32.xlu0 %v736, 48
    %v745 = vpop.permute.xlu0 %744
    %746 = vrot.lane.b32.xlu0 %v739, 48
    %v747 = vpop.permute.xlu0 %746
    %748 = vrot.lane.b32.xlu0 %v741, 48
    %v749 = vpop.permute.xlu0 %748
    %v754 = vrot.slane %v564, 7
    %v755 = vrot.slane %v554, 7
    %v756 = vsel %vm141, %v754, %v755
    %v757 = vrot.slane %v566, 7
    %v758 = vsel %vm141, %v755, %v757
    %v759 = vrot.slane %v565, 7
    %v760 = vrot.slane %v557, 7
    %v761 = vsel %vm141, %v759, %v760
    %v762 = vrot.slane %v567, 7
    %v763 = vsel %vm141, %v760, %v762
    %764 = vrot.lane.b32.xlu0 %v756, 56
    %v765 = vpop.permute.xlu0 %764
    %766 = vrot.lane.b32.xlu0 %v758, 56
    %v767 = vpop.permute.xlu0 %766
    %768 = vrot.lane.b32.xlu0 %v761, 56
    %v769 = vpop.permute.xlu0 %768
    %770 = vrot.lane.b32.xlu0 %v763, 56
    %v771 = vpop.permute.xlu0 %770
    %776 = vrot.lane.b32.xlu0 %v554, 64
    %v777 = vpop.permute.xlu0 %776
    %778 = vrot.lane.b32.xlu0 %v566, 64
    %v779 = vpop.permute.xlu0 %778
    %780 = vrot.lane.b32.xlu0 %v557, 64
    %v781 = vpop.permute.xlu0 %780
    %782 = vrot.lane.b32.xlu0 %v567, 64
    %v783 = vpop.permute.xlu0 %782
    %792 = vrot.lane.b32.xlu0 %v614, 72
    %v793 = vpop.permute.xlu0 %792
    %794 = vrot.lane.b32.xlu0 %v615, 72
    %v795 = vpop.permute.xlu0 %794
    %796 = vrot.lane.b32.xlu0 %v616, 72
    %v797 = vpop.permute.xlu0 %796
    %798 = vrot.lane.b32.xlu0 %v617, 72
    %v799 = vpop.permute.xlu0 %798
    %v804 = vsel %vm379, %v564, %v633
    %v805 = vsel %vm379, %v554, %v635
    %v806 = vsel %vm379, %v565, %v637
    %v807 = vsel %vm379, %v557, %v639
    %v808 = vsel %vm384, %v804, %v655
    %v809 = vsel %vm384, %v805, %v657
    %v810 = vsel %vm384, %v806, %v659
    %v811 = vsel %vm384, %v807, %v661
    %v812 = vsel %vm389, %v808, %v677
    %v813 = vsel %vm389, %v809, %v679
    %v814 = vsel %vm389, %v810, %v681
    %v815 = vsel %vm389, %v811, %v683
    %v816 = vsel %vm47, %v812, %v699
    %v817 = vsel %vm47, %v813, %v701
    %v818 = vsel %vm47, %v814, %v703
    %v819 = vsel %vm47, %v815, %v705
    %v820 = vsel %vm398, %v816, %v721
    %v821 = vsel %vm398, %v817, %v723
    %v822 = vsel %vm398, %v818, %v725
    %v823 = vsel %vm398, %v819, %v727
    %v824 = vsel %vm403, %v820, %v743
    %v825 = vsel %vm403, %v821, %v745
    %v826 = vsel %vm403, %v822, %v747
    %v827 = vsel %vm403, %v823, %v749
    %v828 = vsel %vm408, %v824, %v765
    %v829 = vsel %vm408, %v825, %v767
    %v830 = vsel %vm408, %v826, %v769
    %v831 = vsel %vm408, %v827, %v771
    %v832 = vsel %vm413, %v828, %v777
    %v833 = vsel %vm413, %v829, %v779
    %v834 = vsel %vm413, %v830, %v781
    %v835 = vsel %vm413, %v831, %v783
    %v836 = vsel %vm418, %v832, %v793
    %v837 = vsel %vm418, %v833, %v795
    %v838 = vsel %vm418, %v834, %v797
    %v839 = vsel %vm418, %v835, %v799
    %v840 = vld [vmem:[%s1 + $0x54] sm:$0xf]
    %v841 = vld [vmem:[%s1 + $0x58] sm:$0xf]
    %v842 = vld [vmem:[%s1 + $0x5c] sm:$0xf]
    %v843 = vld [vmem:[%s1 + $0x60] sm:$0xf]
    %v844 = vld [vmem:[%s1 + $0x64] sm:$0xf]
    %v845 = vld [vmem:[%s1 + $0x68] sm:$0xf]
    %v846 = vld [vmem:[%s1 + $0x6c] sm:$0xf]
    %v847 = vld [vmem:[%s1 + $0x70] sm:$0xf]
    %v848 = vld [vmem:[%s1 + $0x74] sm:$0xf]
    %v849 = vld [vmem:[%s1 + $0x78] sm:$0xf]
    %v850 = vld [vmem:[%s1 + $0x7c] sm:$0xf]
    %v851 = vld [vmem:[%s1 + $0x80] sm:$0xf]
    %v852 = vld [vmem:[%s1 + $0x84] sm:$0xf]
    %v853 = vpack.c.bf16 %v837, %v836
    %v854 = vpack.c.bf16 %v839, %v838
    %v868 = vunpack.c.l.b16 %v840
    %v869 = vunpack.c.l.b16 %v841
    %v870 = vunpack.c.l.b16 %v842
    %v871 = vunpack.c.l.b16 %v843
    %v872 = vunpack.c.l.b16 %v844
    %v873 = vunpack.c.l.b16 %v845
    %v874 = vunpack.c.l.b16 %v846
    %v875 = vunpack.c.l.b16 %v847
    %v876 = vunpack.c.l.b16 %v848
    %v877 = vunpack.c.l.b16 %v849
    %v878 = vunpack.c.l.b16 %v850
    %v879 = vunpack.c.l.b16 %v851
    %v880 = vunpack.c.l.b16 %v852
    %v881 = vpack.c.b16 %v869, %v868
    %v882 = vpack.c.b16 %v871, %v870
    %v883 = vpack.c.b16 %v873, %v872
    %v884 = vpack.c.b16 %v875, %v874
    %v885 = vpack.c.b16 %v877, %v876
    %v886 = vpack.c.b16 %v879, %v878
    %v887 = vpack.c.b16 %v880, %v880
    %v895 = vsel %vm477, %v853, 0
    %v898 = vsel %vm477, %v854, 0
    %v901 = vsel %vm120, %v887, 0
    %903 = vmatpush.bf16.msra.mxu0 0
    %904 = vmatpush.bf16.msra.mxu0 %v901
    %905 = vmatpush.bf16.msra.mxu0 %v886
    %906 = vmatpush.bf16.msra.mxu0 %v885
    %907 = vmatpush.bf16.msra.mxu0 %v884
    %908 = vmatpush.bf16.msra.mxu0 %v883
    %909 = vmatpush.bf16.msra.mxu0 %v882
    %910 = vmatpush.bf16.msra.mxu0 %v881
    %911 = vmatmul.bf16.gmra.mxu0 %v895
    %v912 = vpop.f32.mrf.mxu0
    %v913 = vadd.f32 0.0, %v912
    %v914 = vpop.f32.mrf.mxu0
    %v915 = vadd.f32 0.0, %v914
    %916 = vmatmul.bf16.gmra.mxu0 %v898
    %v917 = vpop.f32.mrf.mxu0
    %v918 = vadd.f32 0.0, %v917
    %v919 = vpop.f32.mrf.mxu0
    %v920 = vadd.f32 0.0, %v919
    %921 = vdwg.mxu0
    %v922 = vperm.slane %v16, 1
    %v923 = vadd.f32 %v913, %v922
    %v924 = vadd.f32 %v915, %v922
    %v925 = vadd.f32 %v918, %v922
    %v926 = vadd.f32 %v920, %v922
    %v927 = vmax.f32 %v923, 0.0
    %v928 = vmax.f32 %v924, 0.0
    %v929 = vmax.f32 %v925, 0.0
    %v930 = vmax.f32 %v926, 0.0
    %v931 = vpack.c.bf16 %v928, %v927
    %v932 = vpack.c.bf16 %v930, %v929
    %933 = vrot.lane.b32.xlu0 %v87, 112
    %v934 = vpop.permute.xlu0 %933
    %935 = vrot.lane.b32.xlu0 %v88, 112
    %v936 = vpop.permute.xlu0 %935
    %v940 = vsel %vm47, %v931, 0
    %v943 = vsel %vm47, %v932, 0
    %945 = vmatpush.bf16.msra.mxu0 0
    %946 = vmatpush.bf16.msra.mxu0 0
    %947 = vmatpush.bf16.msra.mxu0 0
    %948 = vmatpush.bf16.msra.mxu0 0
    %949 = vmatpush.bf16.msra.mxu0 0
    %950 = vmatpush.bf16.msra.mxu0 0
    %951 = vmatpush.bf16.msra.mxu0 %v936
    %952 = vmatpush.bf16.msra.mxu0 %v934
    %953 = vmatmul.bf16.gmra.mxu0 %v940
    %v954 = vpop.f32.mrf.mxu0
    %v955 = vadd.f32 0.0, %v954
    %v956 = vpop.f32.mrf.mxu0
    %v957 = vadd.f32 0.0, %v956
    %958 = vmatmul.bf16.gmra.mxu0 %v943
    %v959 = vpop.f32.mrf.mxu0
    %v960 = vadd.f32 0.0, %v959
    %v961 = vpop.f32.mrf.mxu0
    %v962 = vadd.f32 0.0, %v961
    %963 = vdwg.mxu0
    %v968 = vrot.slane %v955, 4
    %v969 = vrot.slane %v957, 4
    %v970 = vsel %vm120, %v968, %v969
    %v971 = vrot.slane %v960, 4
    %v972 = vrot.slane %v962, 4
    %v973 = vsel %vm120, %v971, %v972
    %v980 = vsel %vm120, 0.0, %v968
    %v981 = vsel %vm120, 0.0, %v971
    %v982 = vsel %vm120, %v969, 0.0
    %v983 = vsel %vm120, %v972, 0.0
    %v988 = vrot.slane %v927, 7
    %v989 = vrot.slane %v928, 7
    %v990 = vsel %vm141, %v988, %v989
    %v991 = vrot.slane %v929, 7
    %v992 = vrot.slane %v930, 7
    %v993 = vsel %vm141, %v991, %v992
    %v1000 = vrot.slane %v928, 6
    %v1001 = vrot.slane %v930, 6
    %v1004 = vsel %vm141, %v927, %v988
    %v1005 = vsel %vm141, %v929, %v991
    %v1006 = vsel %vm141, %v989, %v1000
    %v1007 = vsel %vm141, %v992, %v1001
    %v1008 = vmax.f32 %v927, %v1004
    %v1009 = vmax.f32 %v928, %v990
    %v1010 = vmax.f32 %v929, %v1005
    %v1011 = vmax.f32 %v930, %v993
    %v1016 = vrot.slane %v1004, 2
    %v1017 = vrot.slane %v990, 2
    %v1018 = vsel %vm170, %v1016, %v1017
    %v1019 = vrot.slane %v1006, 2
    %v1020 = vsel %vm170, %v1017, %v1019
    %v1021 = vrot.slane %v1005, 2
    %v1022 = vrot.slane %v993, 2
    %v1023 = vsel %vm170, %v1021, %v1022
    %v1024 = vrot.slane %v1007, 2
    %v1025 = vsel %vm170, %v1022, %v1024
    %v1030 = vmax.f32 %v1008, %v1018
    %v1031 = vmax.f32 %v1009, %v1020
    %v1032 = vmax.f32 %v1010, %v1023
    %v1033 = vmax.f32 %v1011, %v1025
    %v1038 = vrot.slane %v980, 1
    %v1039 = vrot.slane %v970, 1
    %v1040 = vsel %vm193, %v1038, %v1039
    %v1041 = vrot.slane %v982, 1
    %v1042 = vsel %vm193, %v1039, %v1041
    %v1043 = vrot.slane %v981, 1
    %v1044 = vrot.slane %v973, 1
    %v1045 = vsel %vm193, %v1043, %v1044
    %v1046 = vrot.slane %v983, 1
    %v1047 = vsel %vm193, %v1044, %v1046
    %1048 = vrot.lane.b32.xlu0 %v1040, 8
    %v1049 = vpop.permute.xlu0 %1048
    %1050 = vrot.lane.b32.xlu0 %v1042, 8
    %v1051 = vpop.permute.xlu0 %1050
    %1052 = vrot.lane.b32.xlu0 %v1045, 8
    %v1053 = vpop.permute.xlu0 %1052
    %1054 = vrot.lane.b32.xlu0 %v1047, 8
    %v1055 = vpop.permute.xlu0 %1054
    %v1060 = vrot.slane %v980, 2
    %v1061 = vrot.slane %v970, 2
    %v1062 = vsel %vm170, %v1060, %v1061
    %v1063 = vrot.slane %v982, 2
    %v1064 = vsel %vm170, %v1061, %v1063
    %v1065 = vrot.slane %v981, 2
    %v1066 = vrot.slane %v973, 2
    %v1067 = vsel %vm170, %v1065, %v1066
    %v1068 = vrot.slane %v983, 2
    %v1069 = vsel %vm170, %v1066, %v1068
    %1070 = vrot.lane.b32.xlu0 %v1062, 16
    %v1071 = vpop.permute.xlu0 %1070
    %1072 = vrot.lane.b32.xlu0 %v1064, 16
    %v1073 = vpop.permute.xlu0 %1072
    %1074 = vrot.lane.b32.xlu0 %v1067, 16
    %v1075 = vpop.permute.xlu0 %1074
    %1076 = vrot.lane.b32.xlu0 %v1069, 16
    %v1077 = vpop.permute.xlu0 %1076
    %v1082 = vrot.slane %v980, 3
    %v1083 = vrot.slane %v970, 3
    %v1084 = vsel %vm238, %v1082, %v1083
    %v1085 = vrot.slane %v982, 3
    %v1086 = vsel %vm238, %v1083, %v1085
    %v1087 = vrot.slane %v981, 3
    %v1088 = vrot.slane %v973, 3
    %v1089 = vsel %vm238, %v1087, %v1088
    %v1090 = vrot.slane %v983, 3
    %v1091 = vsel %vm238, %v1088, %v1090
    %1092 = vrot.lane.b32.xlu0 %v1084, 24
    %v1093 = vpop.permute.xlu0 %1092
    %1094 = vrot.lane.b32.xlu0 %v1086, 24
    %v1095 = vpop.permute.xlu0 %1094
    %1096 = vrot.lane.b32.xlu0 %v1089, 24
    %v1097 = vpop.permute.xlu0 %1096
    %1098 = vrot.lane.b32.xlu0 %v1091, 24
    %v1099 = vpop.permute.xlu0 %1098
    %v1104 = vrot.slane %v980, 4
    %v1105 = vrot.slane %v970, 4
    %v1106 = vsel %vm120, %v1104, %v1105
    %v1107 = vrot.slane %v982, 4
    %v1108 = vsel %vm120, %v1105, %v1107
    %v1109 = vrot.slane %v981, 4
    %v1110 = vrot.slane %v973, 4
    %v1111 = vsel %vm120, %v1109, %v1110
    %v1112 = vrot.slane %v983, 4
    %v1113 = vsel %vm120, %v1110, %v1112
    %1114 = vrot.lane.b32.xlu0 %v1106, 32
    %v1115 = vpop.permute.xlu0 %1114
    %1116 = vrot.lane.b32.xlu0 %v1108, 32
    %v1117 = vpop.permute.xlu0 %1116
    %1118 = vrot.lane.b32.xlu0 %v1111, 32
    %v1119 = vpop.permute.xlu0 %1118
    %1120 = vrot.lane.b32.xlu0 %v1113, 32
    %v1121 = vpop.permute.xlu0 %1120
    %v1126 = vrot.slane %v980, 5
    %v1127 = vrot.slane %v970, 5
    %v1128 = vsel %vm283, %v1126, %v1127
    %v1129 = vrot.slane %v982, 5
    %v1130 = vsel %vm283, %v1127, %v1129
    %v1131 = vrot.slane %v981, 5
    %v1132 = vrot.slane %v973, 5
    %v1133 = vsel %vm283, %v1131, %v1132
    %v1134 = vrot.slane %v983, 5
    %v1135 = vsel %vm283, %v1132, %v1134
    %1136 = vrot.lane.b32.xlu0 %v1128, 40
    %v1137 = vpop.permute.xlu0 %1136
    %1138 = vrot.lane.b32.xlu0 %v1130, 40
    %v1139 = vpop.permute.xlu0 %1138
    %1140 = vrot.lane.b32.xlu0 %v1133, 40
    %v1141 = vpop.permute.xlu0 %1140
    %1142 = vrot.lane.b32.xlu0 %v1135, 40
    %v1143 = vpop.permute.xlu0 %1142
    %v1148 = vrot.slane %v980, 6
    %v1149 = vrot.slane %v970, 6
    %v1150 = vsel %vm306, %v1148, %v1149
    %v1151 = vrot.slane %v982, 6
    %v1152 = vsel %vm306, %v1149, %v1151
    %v1153 = vrot.slane %v981, 6
    %v1154 = vrot.slane %v973, 6
    %v1155 = vsel %vm306, %v1153, %v1154
    %v1156 = vrot.slane %v983, 6
    %v1157 = vsel %vm306, %v1154, %v1156
    %1158 = vrot.lane.b32.xlu0 %v1150, 48
    %v1159 = vpop.permute.xlu0 %1158
    %1160 = vrot.lane.b32.xlu0 %v1152, 48
    %v1161 = vpop.permute.xlu0 %1160
    %1162 = vrot.lane.b32.xlu0 %v1155, 48
    %v1163 = vpop.permute.xlu0 %1162
    %1164 = vrot.lane.b32.xlu0 %v1157, 48
    %v1165 = vpop.permute.xlu0 %1164
    %v1170 = vrot.slane %v980, 7
    %v1171 = vrot.slane %v970, 7
    %v1172 = vsel %vm141, %v1170, %v1171
    %v1173 = vrot.slane %v982, 7
    %v1174 = vsel %vm141, %v1171, %v1173
    %v1175 = vrot.slane %v981, 7
    %v1176 = vrot.slane %v973, 7
    %v1177 = vsel %vm141, %v1175, %v1176
    %v1178 = vrot.slane %v983, 7
    %v1179 = vsel %vm141, %v1176, %v1178
    %1180 = vrot.lane.b32.xlu0 %v1172, 56
    %v1181 = vpop.permute.xlu0 %1180
    %1182 = vrot.lane.b32.xlu0 %v1174, 56
    %v1183 = vpop.permute.xlu0 %1182
    %1184 = vrot.lane.b32.xlu0 %v1177, 56
    %v1185 = vpop.permute.xlu0 %1184
    %1186 = vrot.lane.b32.xlu0 %v1179, 56
    %v1187 = vpop.permute.xlu0 %1186
    %1192 = vrot.lane.b32.xlu0 %v970, 64
    %v1193 = vpop.permute.xlu0 %1192
    %1194 = vrot.lane.b32.xlu0 %v982, 64
    %v1195 = vpop.permute.xlu0 %1194
    %1196 = vrot.lane.b32.xlu0 %v973, 64
    %v1197 = vpop.permute.xlu0 %1196
    %1198 = vrot.lane.b32.xlu0 %v983, 64
    %v1199 = vpop.permute.xlu0 %1198
    %1208 = vrot.lane.b32.xlu0 %v1030, 72
    %v1209 = vpop.permute.xlu0 %1208
    %1210 = vrot.lane.b32.xlu0 %v1031, 72
    %v1211 = vpop.permute.xlu0 %1210
    %1212 = vrot.lane.b32.xlu0 %v1032, 72
    %v1213 = vpop.permute.xlu0 %1212
    %1214 = vrot.lane.b32.xlu0 %v1033, 72
    %v1215 = vpop.permute.xlu0 %1214
    %1220 = vrot.lane.b32.xlu0 %v64, 104
    %v1221 = vpop.permute.xlu0 %1220
    %1222 = vrot.lane.b32.xlu0 %v66, 104
    %v1223 = vpop.permute.xlu0 %1222
    %1224 = vrot.lane.b32.xlu0 %v69, 104
    %v1225 = vpop.permute.xlu0 %1224
    %1226 = vrot.lane.b32.xlu0 %v71, 104
    %v1227 = vpop.permute.xlu0 %1226
    %v1232 = vsel %vm379, %v980, %v1049
    %v1233 = vsel %vm379, %v970, %v1051
    %v1234 = vsel %vm379, %v981, %v1053
    %v1235 = vsel %vm379, %v973, %v1055
    %v1236 = vsel %vm384, %v1232, %v1071
    %v1237 = vsel %vm384, %v1233, %v1073
    %v1238 = vsel %vm384, %v1234, %v1075
    %v1239 = vsel %vm384, %v1235, %v1077
    %v1240 = vsel %vm389, %v1236, %v1093
    %v1241 = vsel %vm389, %v1237, %v1095
    %v1242 = vsel %vm389, %v1238, %v1097
    %v1243 = vsel %vm389, %v1239, %v1099
    %v1244 = vsel %vm47, %v1240, %v1115
    %v1245 = vsel %vm47, %v1241, %v1117
    %v1246 = vsel %vm47, %v1242, %v1119
    %v1247 = vsel %vm47, %v1243, %v1121
    %v1248 = vsel %vm398, %v1244, %v1137
    %v1249 = vsel %vm398, %v1245, %v1139
    %v1250 = vsel %vm398, %v1246, %v1141
    %v1251 = vsel %vm398, %v1247, %v1143
    %v1252 = vsel %vm403, %v1248, %v1159
    %v1253 = vsel %vm403, %v1249, %v1161
    %v1254 = vsel %vm403, %v1250, %v1163
    %v1255 = vsel %vm403, %v1251, %v1165
    %v1256 = vsel %vm408, %v1252, %v1181
    %v1257 = vsel %vm408, %v1253, %v1183
    %v1258 = vsel %vm408, %v1254, %v1185
    %v1259 = vsel %vm408, %v1255, %v1187
    %v1260 = vsel %vm413, %v1256, %v1193
    %v1261 = vsel %vm413, %v1257, %v1195
    %v1262 = vsel %vm413, %v1258, %v1197
    %v1263 = vsel %vm413, %v1259, %v1199
    %v1264 = vsel %vm418, %v1260, %v1209
    %v1265 = vsel %vm418, %v1261, %v1211
    %v1266 = vsel %vm418, %v1262, %v1213
    %v1267 = vsel %vm418, %v1263, %v1215
    %v1268 = vsel %vm477, %v1264, %v1221
    %v1269 = vsel %vm477, %v1265, %v1223
    %v1270 = vsel %vm477, %v1266, %v1225
    %v1271 = vsel %vm477, %v1267, %v1227
    %v1272 = vld [vmem:[%s1 + $0x98] sm:$0xf]
    %v1273 = vld [vmem:[%s1 + $0x9c] sm:$0xf]
    %v1274 = vld [vmem:[%s1 + $0xa0] sm:$0xf]
    %v1275 = vld [vmem:[%s1 + $0xa4] sm:$0xf]
    %v1276 = vld [vmem:[%s1 + $0xa8] sm:$0xf]
    %v1277 = vld [vmem:[%s1 + $0xac] sm:$0xf]
    %v1278 = vld [vmem:[%s1 + $0xb0] sm:$0xf]
    %v1279 = vld [vmem:[%s1 + $0xb4] sm:$0xf]
    %v1280 = vld [vmem:[%s1 + $0xb8] sm:$0xf]
    %v1281 = vld [vmem:[%s1 + $0xbc] sm:$0xf]
    %v1282 = vld [vmem:[%s1 + $0xc0] sm:$0xf]
    %v1283 = vld [vmem:[%s1 + $0xc4] sm:$0xf]
    %v1284 = vld [vmem:[%s1 + $0xc8] sm:$0xf]
    %v1285 = vld [vmem:[%s1 + $0xcc] sm:$0xf]
    %v1286 = vld [vmem:[%s1 + $0xd0] sm:$0xf]
    %v1287 = vld [vmem:[%s1 + $0xd4] sm:$0xf]
    %v1288 = vld [vmem:[%s1 + $0xd8] sm:$0xf]
    %v1289 = vpack.c.bf16 %v1269, %v1268
    %v1290 = vpack.c.bf16 %v1223, %v1221
    %v1291 = vpack.c.bf16 %v1271, %v1270
    %v1292 = vpack.c.bf16 %v1227, %v1225
    %v1310 = vunpack.c.l.b16 %v1272
    %v1311 = vunpack.c.l.b16 %v1273
    %v1312 = vunpack.c.l.b16 %v1274
    %v1313 = vunpack.c.l.b16 %v1275
    %v1314 = vunpack.c.l.b16 %v1276
    %v1315 = vunpack.c.l.b16 %v1277
    %v1316 = vunpack.c.l.b16 %v1278
    %v1317 = vunpack.c.l.b16 %v1279
    %v1318 = vunpack.c.l.b16 %v1280
    %v1319 = vunpack.c.l.b16 %v1281
    %v1320 = vunpack.c.l.b16 %v1282
    %v1321 = vunpack.c.l.b16 %v1283
    %v1322 = vunpack.c.l.b16 %v1284
    %v1323 = vunpack.c.l.b16 %v1285
    %v1324 = vunpack.c.l.b16 %v1286
    %v1325 = vunpack.c.l.b16 %v1287
    %v1326 = vunpack.c.l.b16 %v1288
    %v1327 = vpack.c.b16 %v1311, %v1310
    %v1328 = vpack.c.b16 %v1313, %v1312
    %v1329 = vpack.c.b16 %v1315, %v1314
    %v1330 = vpack.c.b16 %v1317, %v1316
    %v1331 = vpack.c.b16 %v1319, %v1318
    %v1332 = vpack.c.b16 %v1321, %v1320
    %v1333 = vpack.c.b16 %v1323, %v1322
    %v1334 = vpack.c.b16 %v1325, %v1324
    %v1335 = vpack.c.b16 %v1326, %v1326
    %v1345 = vsel %vm379, %v1290, 0
    %v1348 = vsel %vm379, %v1292, 0
    %v1351 = vsel %vm120, %v1335, 0
    %1353 = vmatpush.bf16.msra.mxu0 %v1334
    %1354 = vmatpush.bf16.msra.mxu0 %v1333
    %1355 = vmatpush.bf16.msra.mxu0 %v1332
    %1356 = vmatpush.bf16.msra.mxu0 %v1331
    %1357 = vmatpush.bf16.msra.mxu0 %v1330
    %1358 = vmatpush.bf16.msra.mxu0 %v1329
    %1359 = vmatpush.bf16.msra.mxu0 %v1328
    %1360 = vmatpush.bf16.msra.mxu0 %v1327
    %1361 = vmatmul.bf16.gmra.mxu0 %v1289
    %v1362 = vpop.f32.mrf.mxu0
    %v1363 = vadd.f32 0.0, %v1362
    %v1364 = vpop.f32.mrf.mxu0
    %v1365 = vadd.f32 0.0, %v1364
    %1366 = vmatmul.bf16.gmra.mxu0 %v1291
    %v1367 = vpop.f32.mrf.mxu0
    %v1368 = vadd.f32 0.0, %v1367
    %v1369 = vpop.f32.mrf.mxu0
    %v1370 = vadd.f32 0.0, %v1369
    %1371 = vdwg.mxu0
    %1372 = vmatpush.bf16.msra.mxu0 0
    %1373 = vmatpush.bf16.msra.mxu0 0
    %1374 = vmatpush.bf16.msra.mxu0 0
    %1375 = vmatpush.bf16.msra.mxu0 0
    %1376 = vmatpush.bf16.msra.mxu0 0
    %1377 = vmatpush.bf16.msra.mxu0 0
    %1378 = vmatpush.bf16.msra.mxu0 0
    %1379 = vmatpush.bf16.msra.mxu0 %v1351
    %1380 = vmatmul.bf16.gmra.mxu0 %v1345
    %v1381 = vpop.f32.mrf.mxu0
    %v1382 = vadd.f32 %v1363, %v1381
    %v1383 = vpop.f32.mrf.mxu0
    %v1384 = vadd.f32 %v1365, %v1383
    %1385 = vmatmul.bf16.gmra.mxu0 %v1348
    %v1386 = vpop.f32.mrf.mxu0
    %v1387 = vadd.f32 %v1368, %v1386
    %v1388 = vpop.f32.mrf.mxu0
    %v1389 = vadd.f32 %v1370, %v1388
    %1390 = vdwg.mxu0
    %v1391 = vperm.slane %v16, 2
    %v1392 = vadd.f32 %v1382, %v1391
    %v1393 = vadd.f32 %v1384, %v1391
    %v1394 = vadd.f32 %v1387, %v1391
    %v1395 = vadd.f32 %v1389, %v1391
    %v1396 = vmax.f32 %v1392, 0.0
    %v1397 = vmax.f32 %v1393, 0.0
    %v1398 = vmax.f32 %v1394, 0.0
    %v1399 = vmax.f32 %v1395, 0.0
    %v1400 = vpack.c.bf16 %v1397, %v1396
    %v1401 = vpack.c.bf16 %v1399, %v1398
    %1402 = vrot.lane.b32.xlu0 %v87, 104
    %v1403 = vpop.permute.xlu0 %1402
    %1404 = vrot.lane.b32.xlu0 %v88, 104
    %v1405 = vpop.permute.xlu0 %1404
    %v1409 = vsel %vm47, %v1400, 0
    %v1412 = vsel %vm47, %v1401, 0
    %1414 = vmatpush.bf16.msra.mxu0 0
    %1415 = vmatpush.bf16.msra.mxu0 0
    %1416 = vmatpush.bf16.msra.mxu0 0
    %1417 = vmatpush.bf16.msra.mxu0 0
    %1418 = vmatpush.bf16.msra.mxu0 0
    %1419 = vmatpush.bf16.msra.mxu0 0
    %1420 = vmatpush.bf16.msra.mxu0 %v1405
    %1421 = vmatpush.bf16.msra.mxu0 %v1403
    %1422 = vmatmul.bf16.gmra.mxu0 %v1409
    %v1423 = vpop.f32.mrf.mxu0
    %v1424 = vadd.f32 0.0, %v1423
    %v1425 = vpop.f32.mrf.mxu0
    %v1426 = vadd.f32 0.0, %v1425
    %1427 = vmatmul.bf16.gmra.mxu0 %v1412
    %v1428 = vpop.f32.mrf.mxu0
    %v1429 = vadd.f32 0.0, %v1428
    %v1430 = vpop.f32.mrf.mxu0
    %v1431 = vadd.f32 0.0, %v1430
    %1432 = vdwg.mxu0
    %v1437 = vrot.slane %v1424, 4
    %v1438 = vrot.slane %v1426, 4
    %v1439 = vsel %vm120, %v1437, %v1438
    %v1440 = vrot.slane %v1429, 4
    %v1441 = vrot.slane %v1431, 4
    %v1442 = vsel %vm120, %v1440, %v1441
    %v1449 = vsel %vm120, 0.0, %v1437
    %v1450 = vsel %vm120, 0.0, %v1440
    %v1451 = vsel %vm120, %v1438, 0.0
    %v1452 = vsel %vm120, %v1441, 0.0
    %v1457 = vrot.slane %v1396, 7
    %v1458 = vrot.slane %v1397, 7
    %v1459 = vsel %vm141, %v1457, %v1458
    %v1460 = vrot.slane %v1398, 7
    %v1461 = vrot.slane %v1399, 7
    %v1462 = vsel %vm141, %v1460, %v1461
    %v1469 = vrot.slane %v1397, 6
    %v1470 = vrot.slane %v1399, 6
    %v1473 = vsel %vm141, %v1396, %v1457
    %v1474 = vsel %vm141, %v1398, %v1460
    %v1475 = vsel %vm141, %v1458, %v1469
    %v1476 = vsel %vm141, %v1461, %v1470
    %v1477 = vmax.f32 %v1396, %v1473
    %v1478 = vmax.f32 %v1397, %v1459
    %v1479 = vmax.f32 %v1398, %v1474
    %v1480 = vmax.f32 %v1399, %v1462
    %v1485 = vrot.slane %v1473, 2
    %v1486 = vrot.slane %v1459, 2
    %v1487 = vsel %vm170, %v1485, %v1486
    %v1488 = vrot.slane %v1475, 2
    %v1489 = vsel %vm170, %v1486, %v1488
    %v1490 = vrot.slane %v1474, 2
    %v1491 = vrot.slane %v1462, 2
    %v1492 = vsel %vm170, %v1490, %v1491
    %v1493 = vrot.slane %v1476, 2
    %v1494 = vsel %vm170, %v1491, %v1493
    %v1499 = vmax.f32 %v1477, %v1487
    %v1500 = vmax.f32 %v1478, %v1489
    %v1501 = vmax.f32 %v1479, %v1492
    %v1502 = vmax.f32 %v1480, %v1494
    %v1507 = vrot.slane %v1449, 1
    %v1508 = vrot.slane %v1439, 1
    %v1509 = vsel %vm193, %v1507, %v1508
    %v1510 = vrot.slane %v1451, 1
    %v1511 = vsel %vm193, %v1508, %v1510
    %v1512 = vrot.slane %v1450, 1
    %v1513 = vrot.slane %v1442, 1
    %v1514 = vsel %vm193, %v1512, %v1513
    %v1515 = vrot.slane %v1452, 1
    %v1516 = vsel %vm193, %v1513, %v1515
    %1517 = vrot.lane.b32.xlu0 %v1509, 8
    %v1518 = vpop.permute.xlu0 %1517
    %1519 = vrot.lane.b32.xlu0 %v1511, 8
    %v1520 = vpop.permute.xlu0 %1519
    %1521 = vrot.lane.b32.xlu0 %v1514, 8
    %v1522 = vpop.permute.xlu0 %1521
    %1523 = vrot.lane.b32.xlu0 %v1516, 8
    %v1524 = vpop.permute.xlu0 %1523
    %v1529 = vrot.slane %v1449, 2
    %v1530 = vrot.slane %v1439, 2
    %v1531 = vsel %vm170, %v1529, %v1530
    %v1532 = vrot.slane %v1451, 2
    %v1533 = vsel %vm170, %v1530, %v1532
    %v1534 = vrot.slane %v1450, 2
    %v1535 = vrot.slane %v1442, 2
    %v1536 = vsel %vm170, %v1534, %v1535
    %v1537 = vrot.slane %v1452, 2
    %v1538 = vsel %vm170, %v1535, %v1537
    %1539 = vrot.lane.b32.xlu0 %v1531, 16
    %v1540 = vpop.permute.xlu0 %1539
    %1541 = vrot.lane.b32.xlu0 %v1533, 16
    %v1542 = vpop.permute.xlu0 %1541
    %1543 = vrot.lane.b32.xlu0 %v1536, 16
    %v1544 = vpop.permute.xlu0 %1543
    %1545 = vrot.lane.b32.xlu0 %v1538, 16
    %v1546 = vpop.permute.xlu0 %1545
    %v1551 = vrot.slane %v1449, 3
    %v1552 = vrot.slane %v1439, 3
    %v1553 = vsel %vm238, %v1551, %v1552
    %v1554 = vrot.slane %v1451, 3
    %v1555 = vsel %vm238, %v1552, %v1554
    %v1556 = vrot.slane %v1450, 3
    %v1557 = vrot.slane %v1442, 3
    %v1558 = vsel %vm238, %v1556, %v1557
    %v1559 = vrot.slane %v1452, 3
    %v1560 = vsel %vm238, %v1557, %v1559
    %1561 = vrot.lane.b32.xlu0 %v1553, 24
    %v1562 = vpop.permute.xlu0 %1561
    %1563 = vrot.lane.b32.xlu0 %v1555, 24
    %v1564 = vpop.permute.xlu0 %1563
    %1565 = vrot.lane.b32.xlu0 %v1558, 24
    %v1566 = vpop.permute.xlu0 %1565
    %1567 = vrot.lane.b32.xlu0 %v1560, 24
    %v1568 = vpop.permute.xlu0 %1567
    %v1573 = vrot.slane %v1449, 4
    %v1574 = vrot.slane %v1439, 4
    %v1575 = vsel %vm120, %v1573, %v1574
    %v1576 = vrot.slane %v1451, 4
    %v1577 = vsel %vm120, %v1574, %v1576
    %v1578 = vrot.slane %v1450, 4
    %v1579 = vrot.slane %v1442, 4
    %v1580 = vsel %vm120, %v1578, %v1579
    %v1581 = vrot.slane %v1452, 4
    %v1582 = vsel %vm120, %v1579, %v1581
    %1583 = vrot.lane.b32.xlu0 %v1575, 32
    %v1584 = vpop.permute.xlu0 %1583
    %1585 = vrot.lane.b32.xlu0 %v1577, 32
    %v1586 = vpop.permute.xlu0 %1585
    %1587 = vrot.lane.b32.xlu0 %v1580, 32
    %v1588 = vpop.permute.xlu0 %1587
    %1589 = vrot.lane.b32.xlu0 %v1582, 32
    %v1590 = vpop.permute.xlu0 %1589
    %v1595 = vrot.slane %v1449, 5
    %v1596 = vrot.slane %v1439, 5
    %v1597 = vsel %vm283, %v1595, %v1596
    %v1598 = vrot.slane %v1451, 5
    %v1599 = vsel %vm283, %v1596, %v1598
    %v1600 = vrot.slane %v1450, 5
    %v1601 = vrot.slane %v1442, 5
    %v1602 = vsel %vm283, %v1600, %v1601
    %v1603 = vrot.slane %v1452, 5
    %v1604 = vsel %vm283, %v1601, %v1603
    %1605 = vrot.lane.b32.xlu0 %v1597, 40
    %v1606 = vpop.permute.xlu0 %1605
    %1607 = vrot.lane.b32.xlu0 %v1599, 40
    %v1608 = vpop.permute.xlu0 %1607
    %1609 = vrot.lane.b32.xlu0 %v1602, 40
    %v1610 = vpop.permute.xlu0 %1609
    %1611 = vrot.lane.b32.xlu0 %v1604, 40
    %v1612 = vpop.permute.xlu0 %1611
    %v1617 = vrot.slane %v1449, 6
    %v1618 = vrot.slane %v1439, 6
    %v1619 = vsel %vm306, %v1617, %v1618
    %v1620 = vrot.slane %v1451, 6
    %v1621 = vsel %vm306, %v1618, %v1620
    %v1622 = vrot.slane %v1450, 6
    %v1623 = vrot.slane %v1442, 6
    %v1624 = vsel %vm306, %v1622, %v1623
    %v1625 = vrot.slane %v1452, 6
    %v1626 = vsel %vm306, %v1623, %v1625
    %1627 = vrot.lane.b32.xlu0 %v1619, 48
    %v1628 = vpop.permute.xlu0 %1627
    %1629 = vrot.lane.b32.xlu0 %v1621, 48
    %v1630 = vpop.permute.xlu0 %1629
    %1631 = vrot.lane.b32.xlu0 %v1624, 48
    %v1632 = vpop.permute.xlu0 %1631
    %1633 = vrot.lane.b32.xlu0 %v1626, 48
    %v1634 = vpop.permute.xlu0 %1633
    %v1639 = vrot.slane %v1449, 7
    %v1640 = vrot.slane %v1439, 7
    %v1641 = vsel %vm141, %v1639, %v1640
    %v1642 = vrot.slane %v1451, 7
    %v1643 = vsel %vm141, %v1640, %v1642
    %v1644 = vrot.slane %v1450, 7
    %v1645 = vrot.slane %v1442, 7
    %v1646 = vsel %vm141, %v1644, %v1645
    %v1647 = vrot.slane %v1452, 7
    %v1648 = vsel %vm141, %v1645, %v1647
    %1649 = vrot.lane.b32.xlu0 %v1641, 56
    %v1650 = vpop.permute.xlu0 %1649
    %1651 = vrot.lane.b32.xlu0 %v1643, 56
    %v1652 = vpop.permute.xlu0 %1651
    %1653 = vrot.lane.b32.xlu0 %v1646, 56
    %v1654 = vpop.permute.xlu0 %1653
    %1655 = vrot.lane.b32.xlu0 %v1648, 56
    %v1656 = vpop.permute.xlu0 %1655
    %1661 = vrot.lane.b32.xlu0 %v1439, 64
    %v1662 = vpop.permute.xlu0 %1661
    %1663 = vrot.lane.b32.xlu0 %v1451, 64
    %v1664 = vpop.permute.xlu0 %1663
    %1665 = vrot.lane.b32.xlu0 %v1442, 64
    %v1666 = vpop.permute.xlu0 %1665
    %1667 = vrot.lane.b32.xlu0 %v1452, 64
    %v1668 = vpop.permute.xlu0 %1667
    %1677 = vrot.lane.b32.xlu0 %v1499, 72
    %v1678 = vpop.permute.xlu0 %1677
    %1679 = vrot.lane.b32.xlu0 %v1500, 72
    %v1680 = vpop.permute.xlu0 %1679
    %1681 = vrot.lane.b32.xlu0 %v1501, 72
    %v1682 = vpop.permute.xlu0 %1681
    %1683 = vrot.lane.b32.xlu0 %v1502, 72
    %v1684 = vpop.permute.xlu0 %1683
    %v1689 = vsel %vm379, %v1449, %v1518
    %v1690 = vsel %vm379, %v1439, %v1520
    %v1691 = vsel %vm379, %v1450, %v1522
    %v1692 = vsel %vm379, %v1442, %v1524
    %v1693 = vsel %vm384, %v1689, %v1540
    %v1694 = vsel %vm384, %v1690, %v1542
    %v1695 = vsel %vm384, %v1691, %v1544
    %v1696 = vsel %vm384, %v1692, %v1546
    %v1697 = vsel %vm389, %v1693, %v1562
    %v1698 = vsel %vm389, %v1694, %v1564
    %v1699 = vsel %vm389, %v1695, %v1566
    %v1700 = vsel %vm389, %v1696, %v1568
    %v1701 = vsel %vm47, %v1697, %v1584
    %v1702 = vsel %vm47, %v1698, %v1586
    %v1703 = vsel %vm47, %v1699, %v1588
    %v1704 = vsel %vm47, %v1700, %v1590
    %v1705 = vsel %vm398, %v1701, %v1606
    %v1706 = vsel %vm398, %v1702, %v1608
    %v1707 = vsel %vm398, %v1703, %v1610
    %v1708 = vsel %vm398, %v1704, %v1612
    %v1709 = vsel %vm403, %v1705, %v1628
    %v1710 = vsel %vm403, %v1706, %v1630
    %v1711 = vsel %vm403, %v1707, %v1632
    %v1712 = vsel %vm403, %v1708, %v1634
    %v1713 = vsel %vm408, %v1709, %v1650
    %v1714 = vsel %vm408, %v1710, %v1652
    %v1715 = vsel %vm408, %v1711, %v1654
    %v1716 = vsel %vm408, %v1712, %v1656
    %v1717 = vsel %vm413, %v1713, %v1662
    %v1718 = vsel %vm413, %v1714, %v1664
    %v1719 = vsel %vm413, %v1715, %v1666
    %v1720 = vsel %vm413, %v1716, %v1668
    %v1721 = vsel %vm418, %v1717, %v1678
    %v1722 = vsel %vm418, %v1718, %v1680
    %v1723 = vsel %vm418, %v1719, %v1682
    %v1724 = vsel %vm418, %v1720, %v1684
    %v1725 = vld [vmem:[%s1 + $0xdc] sm:$0xf]
    %v1726 = vld [vmem:[%s1 + $0xe0] sm:$0xf]
    %v1727 = vld [vmem:[%s1 + $0xe4] sm:$0xf]
    %v1728 = vld [vmem:[%s1 + $0xe8] sm:$0xf]
    %v1729 = vld [vmem:[%s1 + $0xec] sm:$0xf]
    %v1730 = vld [vmem:[%s1 + $0xf0] sm:$0xf]
    %v1731 = vld [vmem:[%s1 + $0xf4] sm:$0xf]
    %v1732 = vld [vmem:[%s1 + $0xf8] sm:$0xf]
    %v1733 = vld [vmem:[%s1 + $0xfc] sm:$0xf]
    %v1734 = vld [vmem:[%s1 + $0x100] sm:$0xf]
    %v1735 = vld [vmem:[%s1 + $0x104] sm:$0xf]
    %v1736 = vld [vmem:[%s1 + $0x108] sm:$0xf]
    %v1737 = vld [vmem:[%s1 + $0x10c] sm:$0xf]
    %v1738 = vpack.c.bf16 %v1722, %v1721
    %v1739 = vpack.c.bf16 %v1724, %v1723
    %v1753 = vunpack.c.l.b16 %v1725
    %v1754 = vunpack.c.l.b16 %v1726
    %v1755 = vunpack.c.l.b16 %v1727
    %v1756 = vunpack.c.l.b16 %v1728
    %v1757 = vunpack.c.l.b16 %v1729
    %v1758 = vunpack.c.l.b16 %v1730
    %v1759 = vunpack.c.l.b16 %v1731
    %v1760 = vunpack.c.l.b16 %v1732
    %v1761 = vunpack.c.l.b16 %v1733
    %v1762 = vunpack.c.l.b16 %v1734
    %v1763 = vunpack.c.l.b16 %v1735
    %v1764 = vunpack.c.l.b16 %v1736
    %v1765 = vunpack.c.l.b16 %v1737
    %v1766 = vpack.c.b16 %v1754, %v1753
    %v1767 = vpack.c.b16 %v1756, %v1755
    %v1768 = vpack.c.b16 %v1758, %v1757
    %v1769 = vpack.c.b16 %v1760, %v1759
    %v1770 = vpack.c.b16 %v1762, %v1761
    %v1771 = vpack.c.b16 %v1764, %v1763
    %v1772 = vpack.c.b16 %v1765, %v1765
    %v1780 = vsel %vm477, %v1738, 0
    %v1783 = vsel %vm477, %v1739, 0
    %v1786 = vsel %vm120, %v1772, 0
    %1788 = vmatpush.bf16.msra.mxu0 0
    %1789 = vmatpush.bf16.msra.mxu0 %v1786
    %1790 = vmatpush.bf16.msra.mxu0 %v1771
    %1791 = vmatpush.bf16.msra.mxu0 %v1770
    %1792 = vmatpush.bf16.msra.mxu0 %v1769
    %1793 = vmatpush.bf16.msra.mxu0 %v1768
    %1794 = vmatpush.bf16.msra.mxu0 %v1767
    %1795 = vmatpush.bf16.msra.mxu0 %v1766
    %1796 = vmatmul.bf16.gmra.mxu0 %v1780
    %v1797 = vpop.f32.mrf.mxu0
    %v1798 = vadd.f32 0.0, %v1797
    %v1799 = vpop.f32.mrf.mxu0
    %v1800 = vadd.f32 0.0, %v1799
    %1801 = vmatmul.bf16.gmra.mxu0 %v1783
    %v1802 = vpop.f32.mrf.mxu0
    %v1803 = vadd.f32 0.0, %v1802
    %v1804 = vpop.f32.mrf.mxu0
    %v1805 = vadd.f32 0.0, %v1804
    %1806 = vdwg.mxu0
    %v1807 = vperm.slane %v16, 3
    %v1808 = vadd.f32 %v1798, %v1807
    %v1809 = vadd.f32 %v1800, %v1807
    %v1810 = vadd.f32 %v1803, %v1807
    %v1811 = vadd.f32 %v1805, %v1807
    %v1812 = vmax.f32 %v1808, 0.0
    %v1813 = vmax.f32 %v1809, 0.0
    %v1814 = vmax.f32 %v1810, 0.0
    %v1815 = vmax.f32 %v1811, 0.0
    %v1816 = vld [vmem:[%s1 + $0x1b8] sm:$0xf]
    %v1817 = vld [vmem:[%s1 + $0x1bc] sm:$0xf]
    %v1818 = vld [vmem:[%s1 + $0x1c0] sm:$0xf]
    %v1819 = vld [vmem:[%s1 + $0x1c4] sm:$0xf]
    %v1820 = vpack.c.bf16 %v1813, %v1812
    %v1821 = vpack.c.bf16 %v1815, %v1814
    %v1826 = vunpack.c.l.b16 %v1816
    %v1827 = vunpack.c.l.b16 %v1817
    %v1828 = vunpack.c.l.b16 %v1818
    %v1829 = vunpack.c.l.b16 %v1819
    %v1830 = vpack.c.b16 %v1827, %v1826
    %v1831 = vpack.c.b16 %v1829, %v1828
    %v1835 = vsel %vm47, %v1820, 0
    %v1838 = vsel %vm47, %v1821, 0
    %1840 = vmatpush.bf16.msra.mxu0 0
    %1841 = vmatpush.bf16.msra.mxu0 0
    %1842 = vmatpush.bf16.msra.mxu0 0
    %1843 = vmatpush.bf16.msra.mxu0 0
    %1844 = vmatpush.bf16.msra.mxu0 0
    %1845 = vmatpush.bf16.msra.mxu0 0
    %1846 = vmatpush.bf16.msra.mxu0 %v1831
    %1847 = vmatpush.bf16.msra.mxu0 %v1830
    %1848 = vmatmul.bf16.gmra.mxu0 %v1835
    %v1849 = vpop.f32.mrf.mxu0
    %v1850 = vadd.f32 0.0, %v1849
    %v1851 = vpop.f32.mrf.mxu0
    %v1852 = vadd.f32 0.0, %v1851
    %1853 = vmatmul.bf16.gmra.mxu0 %v1838
    %v1854 = vpop.f32.mrf.mxu0
    %v1855 = vadd.f32 0.0, %v1854
    %v1856 = vpop.f32.mrf.mxu0
    %v1857 = vadd.f32 0.0, %v1856
    %1858 = vdwg.mxu0
    %v1863 = vrot.slane %v1850, 4
    %v1864 = vrot.slane %v1852, 4
    %v1865 = vsel %vm120, %v1863, %v1864
    %v1866 = vrot.slane %v1855, 4
    %v1867 = vrot.slane %v1857, 4
    %v1868 = vsel %vm120, %v1866, %v1867
    %v1875 = vsel %vm120, 0.0, %v1863
    %v1876 = vsel %vm120, 0.0, %v1866
    %v1877 = vsel %vm120, %v1864, 0.0
    %v1878 = vsel %vm120, %v1867, 0.0
    %v1883 = vrot.slane %v1812, 7
    %v1884 = vrot.slane %v1813, 7
    %v1885 = vsel %vm141, %v1883, %v1884
    %v1886 = vrot.slane %v1814, 7
    %v1887 = vrot.slane %v1815, 7
    %v1888 = vsel %vm141, %v1886, %v1887
    %v1895 = vrot.slane %v1813, 6
    %v1896 = vrot.slane %v1815, 6
    %v1899 = vsel %vm141, %v1812, %v1883
    %v1900 = vsel %vm141, %v1814, %v1886
    %v1901 = vsel %vm141, %v1884, %v1895
    %v1902 = vsel %vm141, %v1887, %v1896
    %v1903 = vmax.f32 %v1812, %v1899
    %v1904 = vmax.f32 %v1813, %v1885
    %v1905 = vmax.f32 %v1814, %v1900
    %v1906 = vmax.f32 %v1815, %v1888
    %v1911 = vrot.slane %v1899, 2
    %v1912 = vrot.slane %v1885, 2
    %v1913 = vsel %vm170, %v1911, %v1912
    %v1914 = vrot.slane %v1901, 2
    %v1915 = vsel %vm170, %v1912, %v1914
    %v1916 = vrot.slane %v1900, 2
    %v1917 = vrot.slane %v1888, 2
    %v1918 = vsel %vm170, %v1916, %v1917
    %v1919 = vrot.slane %v1902, 2
    %v1920 = vsel %vm170, %v1917, %v1919
    %v1925 = vmax.f32 %v1903, %v1913
    %v1926 = vmax.f32 %v1904, %v1915
    %v1927 = vmax.f32 %v1905, %v1918
    %v1928 = vmax.f32 %v1906, %v1920
    %v1933 = vrot.slane %v1875, 1
    %v1934 = vrot.slane %v1865, 1
    %v1935 = vsel %vm193, %v1933, %v1934
    %v1936 = vrot.slane %v1877, 1
    %v1937 = vsel %vm193, %v1934, %v1936
    %v1938 = vrot.slane %v1876, 1
    %v1939 = vrot.slane %v1868, 1
    %v1940 = vsel %vm193, %v1938, %v1939
    %v1941 = vrot.slane %v1878, 1
    %v1942 = vsel %vm193, %v1939, %v1941
    %1943 = vrot.lane.b32.xlu0 %v1935, 8
    %v1944 = vpop.permute.xlu0 %1943
    %1945 = vrot.lane.b32.xlu0 %v1937, 8
    %v1946 = vpop.permute.xlu0 %1945
    %1947 = vrot.lane.b32.xlu0 %v1940, 8
    %v1948 = vpop.permute.xlu0 %1947
    %1949 = vrot.lane.b32.xlu0 %v1942, 8
    %v1950 = vpop.permute.xlu0 %1949
    %v1955 = vrot.slane %v1875, 2
    %v1956 = vrot.slane %v1865, 2
    %v1957 = vsel %vm170, %v1955, %v1956
    %v1958 = vrot.slane %v1877, 2
    %v1959 = vsel %vm170, %v1956, %v1958
    %v1960 = vrot.slane %v1876, 2
    %v1961 = vrot.slane %v1868, 2
    %v1962 = vsel %vm170, %v1960, %v1961
    %v1963 = vrot.slane %v1878, 2
    %v1964 = vsel %vm170, %v1961, %v1963
    %1965 = vrot.lane.b32.xlu0 %v1957, 16
    %v1966 = vpop.permute.xlu0 %1965
    %1967 = vrot.lane.b32.xlu0 %v1959, 16
    %v1968 = vpop.permute.xlu0 %1967
    %1969 = vrot.lane.b32.xlu0 %v1962, 16
    %v1970 = vpop.permute.xlu0 %1969
    %1971 = vrot.lane.b32.xlu0 %v1964, 16
    %v1972 = vpop.permute.xlu0 %1971
    %v1977 = vrot.slane %v1875, 3
    %v1978 = vrot.slane %v1865, 3
    %v1979 = vsel %vm238, %v1977, %v1978
    %v1980 = vrot.slane %v1877, 3
    %v1981 = vsel %vm238, %v1978, %v1980
    %v1982 = vrot.slane %v1876, 3
    %v1983 = vrot.slane %v1868, 3
    %v1984 = vsel %vm238, %v1982, %v1983
    %v1985 = vrot.slane %v1878, 3
    %v1986 = vsel %vm238, %v1983, %v1985
    %1987 = vrot.lane.b32.xlu0 %v1979, 24
    %v1988 = vpop.permute.xlu0 %1987
    %1989 = vrot.lane.b32.xlu0 %v1981, 24
    %v1990 = vpop.permute.xlu0 %1989
    %1991 = vrot.lane.b32.xlu0 %v1984, 24
    %v1992 = vpop.permute.xlu0 %1991
    %1993 = vrot.lane.b32.xlu0 %v1986, 24
    %v1994 = vpop.permute.xlu0 %1993
    %v1999 = vrot.slane %v1875, 4
    %v2000 = vrot.slane %v1865, 4
    %v2001 = vsel %vm120, %v1999, %v2000
    %v2002 = vrot.slane %v1877, 4
    %v2003 = vsel %vm120, %v2000, %v2002
    %v2004 = vrot.slane %v1876, 4
    %v2005 = vrot.slane %v1868, 4
    %v2006 = vsel %vm120, %v2004, %v2005
    %v2007 = vrot.slane %v1878, 4
    %v2008 = vsel %vm120, %v2005, %v2007
    %2009 = vrot.lane.b32.xlu0 %v2001, 32
    %v2010 = vpop.permute.xlu0 %2009
    %2011 = vrot.lane.b32.xlu0 %v2003, 32
    %v2012 = vpop.permute.xlu0 %2011
    %2013 = vrot.lane.b32.xlu0 %v2006, 32
    %v2014 = vpop.permute.xlu0 %2013
    %2015 = vrot.lane.b32.xlu0 %v2008, 32
    %v2016 = vpop.permute.xlu0 %2015
    %v2021 = vrot.slane %v1875, 5
    %v2022 = vrot.slane %v1865, 5
    %v2023 = vsel %vm283, %v2021, %v2022
    %v2024 = vrot.slane %v1877, 5
    %v2025 = vsel %vm283, %v2022, %v2024
    %v2026 = vrot.slane %v1876, 5
    %v2027 = vrot.slane %v1868, 5
    %v2028 = vsel %vm283, %v2026, %v2027
    %v2029 = vrot.slane %v1878, 5
    %v2030 = vsel %vm283, %v2027, %v2029
    %2031 = vrot.lane.b32.xlu0 %v2023, 40
    %v2032 = vpop.permute.xlu0 %2031
    %2033 = vrot.lane.b32.xlu0 %v2025, 40
    %v2034 = vpop.permute.xlu0 %2033
    %2035 = vrot.lane.b32.xlu0 %v2028, 40
    %v2036 = vpop.permute.xlu0 %2035
    %2037 = vrot.lane.b32.xlu0 %v2030, 40
    %v2038 = vpop.permute.xlu0 %2037
    %v2043 = vrot.slane %v1875, 6
    %v2044 = vrot.slane %v1865, 6
    %v2045 = vsel %vm306, %v2043, %v2044
    %v2046 = vrot.slane %v1877, 6
    %v2047 = vsel %vm306, %v2044, %v2046
    %v2048 = vrot.slane %v1876, 6
    %v2049 = vrot.slane %v1868, 6
    %v2050 = vsel %vm306, %v2048, %v2049
    %v2051 = vrot.slane %v1878, 6
    %v2052 = vsel %vm306, %v2049, %v2051
    %2053 = vrot.lane.b32.xlu0 %v2045, 48
    %v2054 = vpop.permute.xlu0 %2053
    %2055 = vrot.lane.b32.xlu0 %v2047, 48
    %v2056 = vpop.permute.xlu0 %2055
    %2057 = vrot.lane.b32.xlu0 %v2050, 48
    %v2058 = vpop.permute.xlu0 %2057
    %2059 = vrot.lane.b32.xlu0 %v2052, 48
    %v2060 = vpop.permute.xlu0 %2059
    %v2065 = vrot.slane %v1875, 7
    %v2066 = vrot.slane %v1865, 7
    %v2067 = vsel %vm141, %v2065, %v2066
    %v2068 = vrot.slane %v1877, 7
    %v2069 = vsel %vm141, %v2066, %v2068
    %v2070 = vrot.slane %v1876, 7
    %v2071 = vrot.slane %v1868, 7
    %v2072 = vsel %vm141, %v2070, %v2071
    %v2073 = vrot.slane %v1878, 7
    %v2074 = vsel %vm141, %v2071, %v2073
    %2075 = vrot.lane.b32.xlu0 %v2067, 56
    %v2076 = vpop.permute.xlu0 %2075
    %2077 = vrot.lane.b32.xlu0 %v2069, 56
    %v2078 = vpop.permute.xlu0 %2077
    %2079 = vrot.lane.b32.xlu0 %v2072, 56
    %v2080 = vpop.permute.xlu0 %2079
    %2081 = vrot.lane.b32.xlu0 %v2074, 56
    %v2082 = vpop.permute.xlu0 %2081
    %2087 = vrot.lane.b32.xlu0 %v1865, 64
    %v2088 = vpop.permute.xlu0 %2087
    %2089 = vrot.lane.b32.xlu0 %v1877, 64
    %v2090 = vpop.permute.xlu0 %2089
    %2091 = vrot.lane.b32.xlu0 %v1868, 64
    %v2092 = vpop.permute.xlu0 %2091
    %2093 = vrot.lane.b32.xlu0 %v1878, 64
    %v2094 = vpop.permute.xlu0 %2093
    %2103 = vrot.lane.b32.xlu0 %v1925, 72
    %v2104 = vpop.permute.xlu0 %2103
    %2105 = vrot.lane.b32.xlu0 %v1926, 72
    %v2106 = vpop.permute.xlu0 %2105
    %2107 = vrot.lane.b32.xlu0 %v1927, 72
    %v2108 = vpop.permute.xlu0 %2107
    %2109 = vrot.lane.b32.xlu0 %v1928, 72
    %v2110 = vpop.permute.xlu0 %2109
    %v2115 = vsel %vm379, %v1875, %v1944
    %v2116 = vsel %vm379, %v1865, %v1946
    %v2117 = vsel %vm379, %v1876, %v1948
    %v2118 = vsel %vm379, %v1868, %v1950
    %v2119 = vsel %vm384, %v2115, %v1966
    %v2120 = vsel %vm384, %v2116, %v1968
    %v2121 = vsel %vm384, %v2117, %v1970
    %v2122 = vsel %vm384, %v2118, %v1972
    %v2123 = vsel %vm389, %v2119, %v1988
    %v2124 = vsel %vm389, %v2120, %v1990
    %v2125 = vsel %vm389, %v2121, %v1992
    %v2126 = vsel %vm389, %v2122, %v1994
    %v2127 = vsel %vm47, %v2123, %v2010
    %v2128 = vsel %vm47, %v2124, %v2012
    %v2129 = vsel %vm47, %v2125, %v2014
    %v2130 = vsel %vm47, %v2126, %v2016
    %v2131 = vsel %vm398, %v2127, %v2032
    %v2132 = vsel %vm398, %v2128, %v2034
    %v2133 = vsel %vm398, %v2129, %v2036
    %v2134 = vsel %vm398, %v2130, %v2038
    %v2135 = vsel %vm403, %v2131, %v2054
    %v2136 = vsel %vm403, %v2132, %v2056
    %v2137 = vsel %vm403, %v2133, %v2058
    %v2138 = vsel %vm403, %v2134, %v2060
    %v2139 = vsel %vm408, %v2135, %v2076
    %v2140 = vsel %vm408, %v2136, %v2078
    %v2141 = vsel %vm408, %v2137, %v2080
    %v2142 = vsel %vm408, %v2138, %v2082
    %v2143 = vsel %vm413, %v2139, %v2088
    %v2144 = vsel %vm413, %v2140, %v2090
    %v2145 = vsel %vm413, %v2141, %v2092
    %v2146 = vsel %vm413, %v2142, %v2094
    %v2147 = vsel %vm418, %v2143, %v2104
    %v2148 = vsel %vm418, %v2144, %v2106
    %v2149 = vsel %vm418, %v2145, %v2108
    %v2150 = vsel %vm418, %v2146, %v2110
    %v2151 = vld [vmem:[%s1 + $0x120] sm:$0xf]
    %v2152 = vld [vmem:[%s1 + $0x124] sm:$0xf]
    %v2153 = vld [vmem:[%s1 + $0x128] sm:$0xf]
    %v2154 = vld [vmem:[%s1 + $0x12c] sm:$0xf]
    %v2155 = vld [vmem:[%s1 + $0x130] sm:$0xf]
    %v2156 = vld [vmem:[%s1 + $0x134] sm:$0xf]
    %v2157 = vld [vmem:[%s1 + $0x138] sm:$0xf]
    %v2158 = vld [vmem:[%s1 + $0x13c] sm:$0xf]
    %v2159 = vld [vmem:[%s1 + $0x140] sm:$0xf]
    %v2160 = vld [vmem:[%s1 + $0x144] sm:$0xf]
    %v2161 = vld [vmem:[%s1 + $0x148] sm:$0xf]
    %v2162 = vld [vmem:[%s1 + $0x14c] sm:$0xf]
    %v2163 = vld [vmem:[%s1 + $0x150] sm:$0xf]
    %v2164 = vpack.c.bf16 %v2148, %v2147
    %v2165 = vpack.c.bf16 %v2150, %v2149
    %v2179 = vunpack.c.l.b16 %v2151
    %v2180 = vunpack.c.l.b16 %v2152
    %v2181 = vunpack.c.l.b16 %v2153
    %v2182 = vunpack.c.l.b16 %v2154
    %v2183 = vunpack.c.l.b16 %v2155
    %v2184 = vunpack.c.l.b16 %v2156
    %v2185 = vunpack.c.l.b16 %v2157
    %v2186 = vunpack.c.l.b16 %v2158
    %v2187 = vunpack.c.l.b16 %v2159
    %v2188 = vunpack.c.l.b16 %v2160
    %v2189 = vunpack.c.l.b16 %v2161
    %v2190 = vunpack.c.l.b16 %v2162
    %v2191 = vunpack.c.l.b16 %v2163
    %v2192 = vpack.c.b16 %v2180, %v2179
    %v2193 = vpack.c.b16 %v2182, %v2181
    %v2194 = vpack.c.b16 %v2184, %v2183
    %v2195 = vpack.c.b16 %v2186, %v2185
    %v2196 = vpack.c.b16 %v2188, %v2187
    %v2197 = vpack.c.b16 %v2190, %v2189
    %v2198 = vpack.c.b16 %v2191, %v2191
    %v2206 = vsel %vm477, %v2164, 0
    %v2209 = vsel %vm477, %v2165, 0
    %v2212 = vsel %vm120, %v2198, 0
    %2214 = vmatpush.bf16.msra.mxu0 0
    %2215 = vmatpush.bf16.msra.mxu0 %v2212
    %2216 = vmatpush.bf16.msra.mxu0 %v2197
    %2217 = vmatpush.bf16.msra.mxu0 %v2196
    %2218 = vmatpush.bf16.msra.mxu0 %v2195
    %2219 = vmatpush.bf16.msra.mxu0 %v2194
    %2220 = vmatpush.bf16.msra.mxu0 %v2193
    %2221 = vmatpush.bf16.msra.mxu0 %v2192
    %2222 = vmatmul.bf16.gmra.mxu0 %v2206
    %v2223 = vpop.f32.mrf.mxu0
    %v2224 = vadd.f32 0.0, %v2223
    %v2225 = vpop.f32.mrf.mxu0
    %v2226 = vadd.f32 0.0, %v2225
    %2227 = vmatmul.bf16.gmra.mxu0 %v2209
    %v2228 = vpop.f32.mrf.mxu0
    %v2229 = vadd.f32 0.0, %v2228
    %v2230 = vpop.f32.mrf.mxu0
    %v2231 = vadd.f32 0.0, %v2230
    %2232 = vdwg.mxu0
    %v2233 = vperm.slane %v16, 4
    %v2234 = vadd.f32 %v2224, %v2233
    %v2235 = vadd.f32 %v2226, %v2233
    %v2236 = vadd.f32 %v2229, %v2233
    %v2237 = vadd.f32 %v2231, %v2233
    %v2238 = vmax.f32 %v2234, 0.0
    %v2239 = vmax.f32 %v2235, 0.0
    %v2240 = vmax.f32 %v2236, 0.0
    %v2241 = vmax.f32 %v2237, 0.0
    %v2242 = vpack.c.bf16 %v2239, %v2238
    %v2243 = vpack.c.bf16 %v2241, %v2240
    %2244 = vrot.lane.b32.xlu0 %v1830, 120
    %v2245 = vpop.permute.xlu0 %2244
    %2246 = vrot.lane.b32.xlu0 %v1831, 120
    %v2247 = vpop.permute.xlu0 %2246
    %v2251 = vsel %vm47, %v2242, 0
    %v2254 = vsel %vm47, %v2243, 0
    %2256 = vmatpush.bf16.msra.mxu0 0
    %2257 = vmatpush.bf16.msra.mxu0 0
    %2258 = vmatpush.bf16.msra.mxu0 0
    %2259 = vmatpush.bf16.msra.mxu0 0
    %2260 = vmatpush.bf16.msra.mxu0 0
    %2261 = vmatpush.bf16.msra.mxu0 0
    %2262 = vmatpush.bf16.msra.mxu0 %v2247
    %2263 = vmatpush.bf16.msra.mxu0 %v2245
    %2264 = vmatmul.bf16.gmra.mxu0 %v2251
    %v2265 = vpop.f32.mrf.mxu0
    %v2266 = vadd.f32 0.0, %v2265
    %v2267 = vpop.f32.mrf.mxu0
    %v2268 = vadd.f32 0.0, %v2267
    %2269 = vmatmul.bf16.gmra.mxu0 %v2254
    %v2270 = vpop.f32.mrf.mxu0
    %v2271 = vadd.f32 0.0, %v2270
    %v2272 = vpop.f32.mrf.mxu0
    %v2273 = vadd.f32 0.0, %v2272
    %2274 = vdwg.mxu0
    %v2279 = vrot.slane %v2266, 4
    %v2280 = vrot.slane %v2268, 4
    %v2281 = vsel %vm120, %v2279, %v2280
    %v2282 = vrot.slane %v2271, 4
    %v2283 = vrot.slane %v2273, 4
    %v2284 = vsel %vm120, %v2282, %v2283
    %v2291 = vsel %vm120, 0.0, %v2279
    %v2292 = vsel %vm120, 0.0, %v2282
    %v2293 = vsel %vm120, %v2280, 0.0
    %v2294 = vsel %vm120, %v2283, 0.0
    %v2299 = vrot.slane %v2238, 7
    %v2300 = vrot.slane %v2239, 7
    %v2301 = vsel %vm141, %v2299, %v2300
    %v2302 = vrot.slane %v2240, 7
    %v2303 = vrot.slane %v2241, 7
    %v2304 = vsel %vm141, %v2302, %v2303
    %v2311 = vrot.slane %v2239, 6
    %v2312 = vrot.slane %v2241, 6
    %v2315 = vsel %vm141, %v2238, %v2299
    %v2316 = vsel %vm141, %v2240, %v2302
    %v2317 = vsel %vm141, %v2300, %v2311
    %v2318 = vsel %vm141, %v2303, %v2312
    %v2319 = vmax.f32 %v2238, %v2315
    %v2320 = vmax.f32 %v2239, %v2301
    %v2321 = vmax.f32 %v2240, %v2316
    %v2322 = vmax.f32 %v2241, %v2304
    %v2327 = vrot.slane %v2315, 2
    %v2328 = vrot.slane %v2301, 2
    %v2329 = vsel %vm170, %v2327, %v2328
    %v2330 = vrot.slane %v2317, 2
    %v2331 = vsel %vm170, %v2328, %v2330
    %v2332 = vrot.slane %v2316, 2
    %v2333 = vrot.slane %v2304, 2
    %v2334 = vsel %vm170, %v2332, %v2333
    %v2335 = vrot.slane %v2318, 2
    %v2336 = vsel %vm170, %v2333, %v2335
    %v2341 = vmax.f32 %v2319, %v2329
    %v2342 = vmax.f32 %v2320, %v2331
    %v2343 = vmax.f32 %v2321, %v2334
    %v2344 = vmax.f32 %v2322, %v2336
    %v2349 = vrot.slane %v2291, 1
    %v2350 = vrot.slane %v2281, 1
    %v2351 = vsel %vm193, %v2349, %v2350
    %v2352 = vrot.slane %v2293, 1
    %v2353 = vsel %vm193, %v2350, %v2352
    %v2354 = vrot.slane %v2292, 1
    %v2355 = vrot.slane %v2284, 1
    %v2356 = vsel %vm193, %v2354, %v2355
    %v2357 = vrot.slane %v2294, 1
    %v2358 = vsel %vm193, %v2355, %v2357
    %2359 = vrot.lane.b32.xlu0 %v2351, 8
    %v2360 = vpop.permute.xlu0 %2359
    %2361 = vrot.lane.b32.xlu0 %v2353, 8
    %v2362 = vpop.permute.xlu0 %2361
    %2363 = vrot.lane.b32.xlu0 %v2356, 8
    %v2364 = vpop.permute.xlu0 %2363
    %2365 = vrot.lane.b32.xlu0 %v2358, 8
    %v2366 = vpop.permute.xlu0 %2365
    %v2371 = vrot.slane %v2291, 2
    %v2372 = vrot.slane %v2281, 2
    %v2373 = vsel %vm170, %v2371, %v2372
    %v2374 = vrot.slane %v2293, 2
    %v2375 = vsel %vm170, %v2372, %v2374
    %v2376 = vrot.slane %v2292, 2
    %v2377 = vrot.slane %v2284, 2
    %v2378 = vsel %vm170, %v2376, %v2377
    %v2379 = vrot.slane %v2294, 2
    %v2380 = vsel %vm170, %v2377, %v2379
    %2381 = vrot.lane.b32.xlu0 %v2373, 16
    %v2382 = vpop.permute.xlu0 %2381
    %2383 = vrot.lane.b32.xlu0 %v2375, 16
    %v2384 = vpop.permute.xlu0 %2383
    %2385 = vrot.lane.b32.xlu0 %v2378, 16
    %v2386 = vpop.permute.xlu0 %2385
    %2387 = vrot.lane.b32.xlu0 %v2380, 16
    %v2388 = vpop.permute.xlu0 %2387
    %v2393 = vrot.slane %v2291, 3
    %v2394 = vrot.slane %v2281, 3
    %v2395 = vsel %vm238, %v2393, %v2394
    %v2396 = vrot.slane %v2293, 3
    %v2397 = vsel %vm238, %v2394, %v2396
    %v2398 = vrot.slane %v2292, 3
    %v2399 = vrot.slane %v2284, 3
    %v2400 = vsel %vm238, %v2398, %v2399
    %v2401 = vrot.slane %v2294, 3
    %v2402 = vsel %vm238, %v2399, %v2401
    %2403 = vrot.lane.b32.xlu0 %v2395, 24
    %v2404 = vpop.permute.xlu0 %2403
    %2405 = vrot.lane.b32.xlu0 %v2397, 24
    %v2406 = vpop.permute.xlu0 %2405
    %2407 = vrot.lane.b32.xlu0 %v2400, 24
    %v2408 = vpop.permute.xlu0 %2407
    %2409 = vrot.lane.b32.xlu0 %v2402, 24
    %v2410 = vpop.permute.xlu0 %2409
    %v2415 = vrot.slane %v2291, 4
    %v2416 = vrot.slane %v2281, 4
    %v2417 = vsel %vm120, %v2415, %v2416
    %v2418 = vrot.slane %v2293, 4
    %v2419 = vsel %vm120, %v2416, %v2418
    %v2420 = vrot.slane %v2292, 4
    %v2421 = vrot.slane %v2284, 4
    %v2422 = vsel %vm120, %v2420, %v2421
    %v2423 = vrot.slane %v2294, 4
    %v2424 = vsel %vm120, %v2421, %v2423
    %2425 = vrot.lane.b32.xlu0 %v2417, 32
    %v2426 = vpop.permute.xlu0 %2425
    %2427 = vrot.lane.b32.xlu0 %v2419, 32
    %v2428 = vpop.permute.xlu0 %2427
    %2429 = vrot.lane.b32.xlu0 %v2422, 32
    %v2430 = vpop.permute.xlu0 %2429
    %2431 = vrot.lane.b32.xlu0 %v2424, 32
    %v2432 = vpop.permute.xlu0 %2431
    %v2437 = vrot.slane %v2291, 5
    %v2438 = vrot.slane %v2281, 5
    %v2439 = vsel %vm283, %v2437, %v2438
    %v2440 = vrot.slane %v2293, 5
    %v2441 = vsel %vm283, %v2438, %v2440
    %v2442 = vrot.slane %v2292, 5
    %v2443 = vrot.slane %v2284, 5
    %v2444 = vsel %vm283, %v2442, %v2443
    %v2445 = vrot.slane %v2294, 5
    %v2446 = vsel %vm283, %v2443, %v2445
    %2447 = vrot.lane.b32.xlu0 %v2439, 40
    %v2448 = vpop.permute.xlu0 %2447
    %2449 = vrot.lane.b32.xlu0 %v2441, 40
    %v2450 = vpop.permute.xlu0 %2449
    %2451 = vrot.lane.b32.xlu0 %v2444, 40
    %v2452 = vpop.permute.xlu0 %2451
    %2453 = vrot.lane.b32.xlu0 %v2446, 40
    %v2454 = vpop.permute.xlu0 %2453
    %v2459 = vrot.slane %v2291, 6
    %v2460 = vrot.slane %v2281, 6
    %v2461 = vsel %vm306, %v2459, %v2460
    %v2462 = vrot.slane %v2293, 6
    %v2463 = vsel %vm306, %v2460, %v2462
    %v2464 = vrot.slane %v2292, 6
    %v2465 = vrot.slane %v2284, 6
    %v2466 = vsel %vm306, %v2464, %v2465
    %v2467 = vrot.slane %v2294, 6
    %v2468 = vsel %vm306, %v2465, %v2467
    %2469 = vrot.lane.b32.xlu0 %v2461, 48
    %v2470 = vpop.permute.xlu0 %2469
    %2471 = vrot.lane.b32.xlu0 %v2463, 48
    %v2472 = vpop.permute.xlu0 %2471
    %2473 = vrot.lane.b32.xlu0 %v2466, 48
    %v2474 = vpop.permute.xlu0 %2473
    %2475 = vrot.lane.b32.xlu0 %v2468, 48
    %v2476 = vpop.permute.xlu0 %2475
    %v2481 = vrot.slane %v2291, 7
    %v2482 = vrot.slane %v2281, 7
    %v2483 = vsel %vm141, %v2481, %v2482
    %v2484 = vrot.slane %v2293, 7
    %v2485 = vsel %vm141, %v2482, %v2484
    %v2486 = vrot.slane %v2292, 7
    %v2487 = vrot.slane %v2284, 7
    %v2488 = vsel %vm141, %v2486, %v2487
    %v2489 = vrot.slane %v2294, 7
    %v2490 = vsel %vm141, %v2487, %v2489
    %2491 = vrot.lane.b32.xlu0 %v2483, 56
    %v2492 = vpop.permute.xlu0 %2491
    %2493 = vrot.lane.b32.xlu0 %v2485, 56
    %v2494 = vpop.permute.xlu0 %2493
    %2495 = vrot.lane.b32.xlu0 %v2488, 56
    %v2496 = vpop.permute.xlu0 %2495
    %2497 = vrot.lane.b32.xlu0 %v2490, 56
    %v2498 = vpop.permute.xlu0 %2497
    %2503 = vrot.lane.b32.xlu0 %v2281, 64
    %v2504 = vpop.permute.xlu0 %2503
    %2505 = vrot.lane.b32.xlu0 %v2293, 64
    %v2506 = vpop.permute.xlu0 %2505
    %2507 = vrot.lane.b32.xlu0 %v2284, 64
    %v2508 = vpop.permute.xlu0 %2507
    %2509 = vrot.lane.b32.xlu0 %v2294, 64
    %v2510 = vpop.permute.xlu0 %2509
    %2519 = vrot.lane.b32.xlu0 %v2341, 72
    %v2520 = vpop.permute.xlu0 %2519
    %2521 = vrot.lane.b32.xlu0 %v2342, 72
    %v2522 = vpop.permute.xlu0 %2521
    %2523 = vrot.lane.b32.xlu0 %v2343, 72
    %v2524 = vpop.permute.xlu0 %2523
    %2525 = vrot.lane.b32.xlu0 %v2344, 72
    %v2526 = vpop.permute.xlu0 %2525
    %2531 = vrot.lane.b32.xlu0 %v1396, 104
    %v2532 = vpop.permute.xlu0 %2531
    %2533 = vrot.lane.b32.xlu0 %v1397, 104
    %v2534 = vpop.permute.xlu0 %2533
    %2535 = vrot.lane.b32.xlu0 %v1398, 104
    %v2536 = vpop.permute.xlu0 %2535
    %2537 = vrot.lane.b32.xlu0 %v1399, 104
    %v2538 = vpop.permute.xlu0 %2537
    %v2543 = vsel %vm379, %v2291, %v2360
    %v2544 = vsel %vm379, %v2281, %v2362
    %v2545 = vsel %vm379, %v2292, %v2364
    %v2546 = vsel %vm379, %v2284, %v2366
    %v2547 = vsel %vm384, %v2543, %v2382
    %v2548 = vsel %vm384, %v2544, %v2384
    %v2549 = vsel %vm384, %v2545, %v2386
    %v2550 = vsel %vm384, %v2546, %v2388
    %v2551 = vsel %vm389, %v2547, %v2404
    %v2552 = vsel %vm389, %v2548, %v2406
    %v2553 = vsel %vm389, %v2549, %v2408
    %v2554 = vsel %vm389, %v2550, %v2410
    %v2555 = vsel %vm47, %v2551, %v2426
    %v2556 = vsel %vm47, %v2552, %v2428
    %v2557 = vsel %vm47, %v2553, %v2430
    %v2558 = vsel %vm47, %v2554, %v2432
    %v2559 = vsel %vm398, %v2555, %v2448
    %v2560 = vsel %vm398, %v2556, %v2450
    %v2561 = vsel %vm398, %v2557, %v2452
    %v2562 = vsel %vm398, %v2558, %v2454
    %v2563 = vsel %vm403, %v2559, %v2470
    %v2564 = vsel %vm403, %v2560, %v2472
    %v2565 = vsel %vm403, %v2561, %v2474
    %v2566 = vsel %vm403, %v2562, %v2476
    %v2567 = vsel %vm408, %v2563, %v2492
    %v2568 = vsel %vm408, %v2564, %v2494
    %v2569 = vsel %vm408, %v2565, %v2496
    %v2570 = vsel %vm408, %v2566, %v2498
    %v2571 = vsel %vm413, %v2567, %v2504
    %v2572 = vsel %vm413, %v2568, %v2506
    %v2573 = vsel %vm413, %v2569, %v2508
    %v2574 = vsel %vm413, %v2570, %v2510
    %v2575 = vsel %vm418, %v2571, %v2520
    %v2576 = vsel %vm418, %v2572, %v2522
    %v2577 = vsel %vm418, %v2573, %v2524
    %v2578 = vsel %vm418, %v2574, %v2526
    %v2579 = vsel %vm477, %v2575, %v2532
    %v2580 = vsel %vm477, %v2576, %v2534
    %v2581 = vsel %vm477, %v2577, %v2536
    %v2582 = vsel %vm477, %v2578, %v2538
    %v2583 = vld [vmem:[%s1 + $0x164] sm:$0xf]
    %v2584 = vld [vmem:[%s1 + $0x168] sm:$0xf]
    %v2585 = vld [vmem:[%s1 + $0x16c] sm:$0xf]
    %v2586 = vld [vmem:[%s1 + $0x170] sm:$0xf]
    %v2587 = vld [vmem:[%s1 + $0x174] sm:$0xf]
    %v2588 = vld [vmem:[%s1 + $0x178] sm:$0xf]
    %v2589 = vld [vmem:[%s1 + $0x17c] sm:$0xf]
    %v2590 = vld [vmem:[%s1 + $0x180] sm:$0xf]
    %v2591 = vld [vmem:[%s1 + $0x184] sm:$0xf]
    %v2592 = vld [vmem:[%s1 + $0x188] sm:$0xf]
    %v2593 = vld [vmem:[%s1 + $0x18c] sm:$0xf]
    %v2594 = vld [vmem:[%s1 + $0x190] sm:$0xf]
    %v2595 = vld [vmem:[%s1 + $0x194] sm:$0xf]
    %v2596 = vld [vmem:[%s1 + $0x198] sm:$0xf]
    %v2597 = vld [vmem:[%s1 + $0x19c] sm:$0xf]
    %v2598 = vld [vmem:[%s1 + $0x1a0] sm:$0xf]
    %v2599 = vld [vmem:[%s1 + $0x1a4] sm:$0xf]
    %v2600 = vpack.c.bf16 %v2580, %v2579
    %v2601 = vpack.c.bf16 %v2534, %v2532
    %v2602 = vpack.c.bf16 %v2582, %v2581
    %v2603 = vpack.c.bf16 %v2538, %v2536
    %v2621 = vunpack.c.l.b16 %v2583
    %v2622 = vunpack.c.l.b16 %v2584
    %v2623 = vunpack.c.l.b16 %v2585
    %v2624 = vunpack.c.l.b16 %v2586
    %v2625 = vunpack.c.l.b16 %v2587
    %v2626 = vunpack.c.l.b16 %v2588
    %v2627 = vunpack.c.l.b16 %v2589
    %v2628 = vunpack.c.l.b16 %v2590
    %v2629 = vunpack.c.l.b16 %v2591
    %v2630 = vunpack.c.l.b16 %v2592
    %v2631 = vunpack.c.l.b16 %v2593
    %v2632 = vunpack.c.l.b16 %v2594
    %v2633 = vunpack.c.l.b16 %v2595
    %v2634 = vunpack.c.l.b16 %v2596
    %v2635 = vunpack.c.l.b16 %v2597
    %v2636 = vunpack.c.l.b16 %v2598
    %v2637 = vunpack.c.l.b16 %v2599
    %v2638 = vpack.c.b16 %v2622, %v2621
    %v2639 = vpack.c.b16 %v2624, %v2623
    %v2640 = vpack.c.b16 %v2626, %v2625
    %v2641 = vpack.c.b16 %v2628, %v2627
    %v2642 = vpack.c.b16 %v2630, %v2629
    %v2643 = vpack.c.b16 %v2632, %v2631
    %v2644 = vpack.c.b16 %v2634, %v2633
    %v2645 = vpack.c.b16 %v2636, %v2635
    %v2646 = vpack.c.b16 %v2637, %v2637
    %v2656 = vsel %vm379, %v2601, 0
    %v2659 = vsel %vm379, %v2603, 0
    %v2662 = vsel %vm120, %v2646, 0
    %2664 = vmatpush.bf16.msra.mxu0 %v2645
    %2665 = vmatpush.bf16.msra.mxu0 %v2644
    %2666 = vmatpush.bf16.msra.mxu0 %v2643
    %2667 = vmatpush.bf16.msra.mxu0 %v2642
    %2668 = vmatpush.bf16.msra.mxu0 %v2641
    %2669 = vmatpush.bf16.msra.mxu0 %v2640
    %2670 = vmatpush.bf16.msra.mxu0 %v2639
    %2671 = vmatpush.bf16.msra.mxu0 %v2638
    %2672 = vmatmul.bf16.gmra.mxu0 %v2600
    %v2673 = vpop.f32.mrf.mxu0
    %v2674 = vadd.f32 0.0, %v2673
    %v2675 = vpop.f32.mrf.mxu0
    %v2676 = vadd.f32 0.0, %v2675
    %2677 = vmatmul.bf16.gmra.mxu0 %v2602
    %v2678 = vpop.f32.mrf.mxu0
    %v2679 = vadd.f32 0.0, %v2678
    %v2680 = vpop.f32.mrf.mxu0
    %v2681 = vadd.f32 0.0, %v2680
    %2682 = vdwg.mxu0
    %2683 = vmatpush.bf16.msra.mxu0 0
    %2684 = vmatpush.bf16.msra.mxu0 0
    %2685 = vmatpush.bf16.msra.mxu0 0
    %2686 = vmatpush.bf16.msra.mxu0 0
    %2687 = vmatpush.bf16.msra.mxu0 0
    %2688 = vmatpush.bf16.msra.mxu0 0
    %2689 = vmatpush.bf16.msra.mxu0 0
    %2690 = vmatpush.bf16.msra.mxu0 %v2662
    %2691 = vmatmul.bf16.gmra.mxu0 %v2656
    %v2692 = vpop.f32.mrf.mxu0
    %v2693 = vadd.f32 %v2674, %v2692
    %v2694 = vpop.f32.mrf.mxu0
    %v2695 = vadd.f32 %v2676, %v2694
    %2696 = vmatmul.bf16.gmra.mxu0 %v2659
    %v2697 = vpop.f32.mrf.mxu0
    %v2698 = vadd.f32 %v2679, %v2697
    %v2699 = vpop.f32.mrf.mxu0
    %v2700 = vadd.f32 %v2681, %v2699
    %2701 = vdwg.mxu0
    %v2702 = vperm.slane %v16, 5
    %v2703 = vadd.f32 %v2693, %v2702
    %v2704 = vadd.f32 %v2695, %v2702
    %v2705 = vadd.f32 %v2698, %v2702
    %v2706 = vadd.f32 %v2700, %v2702
    %v2707 = vmax.f32 %v2703, 0.0
    %v2708 = vmax.f32 %v2704, 0.0
    %v2709 = vmax.f32 %v2705, 0.0
    %v2710 = vmax.f32 %v2706, 0.0
    %v2711 = vsel %vm47, %v2707, 0.0
    %v2712 = vsel %vm47, %v2708, 0.0
    %v2713 = vadd.f32 %v2711, %v2712
    %v2714 = vrot.slane %v2713, 4
    %v2715 = vadd.f32 %v2713, %v2714
    %v2716 = vrot.slane %v2715, 2
    %v2717 = vadd.f32 %v2715, %v2716
    %v2718 = vrot.slane %v2717, 1
    %v2719 = vadd.f32 %v2717, %v2718
    %v2720 = vsel %vm47, %v2709, 0.0
    %v2721 = vsel %vm47, %v2710, 0.0
    %v2722 = vadd.f32 %v2720, %v2721
    %v2723 = vrot.slane %v2722, 4
    %v2724 = vadd.f32 %v2722, %v2723
    %v2725 = vrot.slane %v2724, 2
    %v2726 = vadd.f32 %v2724, %v2725
    %v2727 = vrot.slane %v2726, 1
    %v2728 = vadd.f32 %v2726, %v2727
    %v2729 = vpack.c.bf16 %v2719, %v2719
    %v2730 = vpack.c.bf16 %v2728, %v2728
    %v2731 = vld [vmem:[%s1 + $0x1c8] sm:$0xf]
    %v2732 = vld [vmem:[%s1 + $0x1cc] sm:$0xf]
    %v2733 = vld [vmem:[%s1 + $0x1d0] sm:$0xf]
    %v2734 = vld [vmem:[%s1 + $0x1d4] sm:$0xf]
    %v2735 = vperm.slane %v16, 6
    %v2738 = vunpack.c.l.b16 %v2729
    %v2739 = vunpack.c.l.b16 %v2730
    %vm2740 = vcmask 1041409
    %v2741 = vsel %vm2740, %v2739, %v2738
    %v2742 = vpack.c.b16 %v2741, %v2741
    %v2747 = vunpack.c.l.b16 %v2731
    %v2748 = vunpack.c.l.b16 %v2732
    %v2749 = vunpack.c.l.b16 %v2733
    %v2750 = vunpack.c.l.b16 %v2734
    %v2751 = vpack.c.b16 %v2748, %v2747
    %v2752 = vpack.c.b16 %v2750, %v2749
    %v2756 = vsel %vm47, %v2742, 0
    %2758 = vmatpush.bf16.msra.mxu0 0
    %2759 = vmatpush.bf16.msra.mxu0 0
    %2760 = vmatpush.bf16.msra.mxu0 0
    %2761 = vmatpush.bf16.msra.mxu0 0
    %2762 = vmatpush.bf16.msra.mxu0 0
    %2763 = vmatpush.bf16.msra.mxu0 0
    %2764 = vmatpush.bf16.msra.mxu0 %v2752
    %2765 = vmatpush.bf16.msra.mxu0 %v2751
    %2766 = vmatmul.bf16.gmra.mxu0 %v2756
    %v2767 = vpop.f32.mrf.mxu0
    %v2768 = vadd.f32 %v2735, %v2767
    %v2769 = vpop.f32.mrf.mxu0
    %2770 = vdwg.mxu0
    %vm2771 = vcmask 254976
    %2772 = vst.msk [vmem:[#allocation2] sm:$0x3] %vm2771, %v2768
    // Predicated region
    $region14: #{tpu_custom_call.1} parent=1 // pred_check
      _
    $region15: #{tpu_custom_call.1} parent=1 // pred_check_branch
      %2774 = sbr.rel (0) target = $region17
    $region16: #{tpu_custom_call.1} parent=1 // pred_region
      %2776 = vsyncadd [#allocation3], 0
      %s2778 = sshll.u32 [#allocation2], 4
      %s2779 = int_to_ptr.vmem [resolvable:$true] %s2778
      %s2780 = sshll.u32 %s3, 4
      %s2781 = int_to_ptr.hbm [resolvable:$true] %s2780
      %2783 = dma.vmem_to_hbm [thread:$0]  %s2779, 32, %s2781, [#allocation3]
    $region17: #{tpu_custom_call.1} parent=1 // pred_fallthru
      _
    // Predicated region
    $region18: #{tpu_custom_call.1} parent=1 // pred_check
      _
    $region19: #{tpu_custom_call.1} parent=1 // pred_check_branch
      %2785 = sbr.rel (0) target = $region21
    $region20: #{tpu_custom_call.1} parent=1 // pred_region
      %2787 = dma.done [#allocation3], 32
    $region21: #{tpu_custom_call.1} parent=1 // pred_fallthru
      _
    %2788 = vsyncpa [#allocation3], 1

</llo_original>
